<compile_context>
chip_gen: v5e
topology: v5e:2x2
jax: 0.10.0
libtpu: 0.0.40
codegen_flags: <defaults>
</compile_context>

<pallas_src>
import jax
import jax.numpy as jnp
from jax.experimental import pallas as pl
from jax.experimental.pallas import tpu as pltpu

HIGHEST = jax.lax.Precision.HIGHEST


def _odeblock_kernel_blockdiag(x_ref, x0_ref, abd_ref, wc_ref, o_ref):
    """Small batch-block path: one block-diagonal adjacency matmul.

      out = A_bd @ x_all + x_all @ W_comb + x0
    with A_bd   = kron(I_bb, sigmoid(alpha)/2 * adj)          (ha folded in)
         W_comb = kron(I_T, w_eff) + kron(w2_eff, I_F) - 2*I  (-2x folded in)
    """
    bb, n, tf = x_ref.shape
    x_all = x_ref[...].reshape(bb * n, tf)                          # (bb*N, TF)
    xmix = jnp.dot(x_all, wc_ref[...],
                   preferred_element_type=jnp.float32, precision=HIGHEST)
    xa = jnp.dot(abd_ref[...], x_all,
                 preferred_element_type=jnp.float32, precision=HIGHEST)
    out = xa + xmix + x0_ref[...].reshape(bb * n, tf).astype(jnp.float32)
    o_ref[...] = out.astype(o_ref.dtype).reshape(bb, n, tf)


def _odeblock_kernel_looped(x_ref, x0_ref, adj_ref, wc_ref, o_ref):
    """Large batch-block path (bb > 8): FLOPs of kron(I_bb, adj) would grow as
    bb^2, so keep a per-batch adjacency loop.  The big mixing result is
    streamed straight to the output so x_all and xmix are never both live
    across the loop (keeps vreg pressure ~one (N, TF) tile)."""
    bb, n, tf = x_ref.shape
    x_all = x_ref[...].reshape(bb * n, tf)
    xmix = jnp.dot(x_all, wc_ref[...],
                   preferred_element_type=jnp.float32, precision=HIGHEST)
    o_ref[...] = xmix.astype(o_ref.dtype).reshape(bb, n, tf)        # stream out
    adj = adj_ref[...]                                              # (N, N)

    def body(bi, carry):
        xb = x_ref[bi]                                              # (N, TF)
        xa = jnp.dot(adj, xb, preferred_element_type=jnp.float32,
                     precision=HIGHEST)
        acc = o_ref[bi].astype(jnp.float32) + xa + x0_ref[bi].astype(jnp.float32)
        o_ref[bi] = acc.astype(o_ref.dtype)
        return carry

    jax.lax.fori_loop(0, bb, body, 0, unroll=True)


def build_operators(adj, alpha, w, d, w2, d2, t, f, dtype):
    """Loop-invariant parameter glue (tiny, pure XLA).

    Precompute once per parameter set (inference / reuse across the two STGODE
    branches) and pass via `operators=` to avoid re-launching this glue on
    every forward."""
    w_eff = jnp.dot(w * jnp.clip(d, 0.0, 1.0)[None, :], w.T, precision=HIGHEST)    # (F,F)
    w2_eff = jnp.dot(w2 * jnp.clip(d2, 0.0, 1.0)[None, :], w2.T, precision=HIGHEST)  # (T,T)
    tf = t * f
    # xw + xw2 - 2x  ==  x_slab @ (kron(I_T, w_eff) + kron(w2_eff, I_F) - 2*I)
    w_comb = (jnp.kron(jnp.eye(t, dtype=dtype), w_eff)
              + jnp.kron(w2_eff, jnp.eye(f, dtype=dtype))
              - 2.0 * jnp.eye(tf, dtype=dtype)).astype(dtype)                        # (TF,TF)
    # (sigmoid(alpha)/2) * xa  ==  (row-scaled adj) @ x
    half_alpha = (0.5 * jax.nn.sigmoid(alpha)).reshape(-1, 1)
    adj_scaled = (half_alpha * adj).astype(dtype)                                    # (N,N)
    return adj_scaled, w_comb


def odeblock_forward(x, x0, adj, alpha, w, d, w2, d2, *,
                     batch_block=None, operators=None):
    """z = x + odefunc(0, x), i.e. odeint(f, x, [0, 1], method='euler')[1]."""
    b, n, t, f = x.shape
    tf = t * f

    if batch_block is None:
        batch_block = b          # single grid step: best on 1-TC v5e/v6e
        try:
            kind = jax.devices()[0].device_kind.lower()
            if "v7" in kind and b >= 2 and b % 2 == 0:
                batch_block = b // 2   # >=2 "parallel" steps -> shard across v7x's 2 TCs
        except Exception:
            pass
    if b % batch_block != 0:     # odd-B fallback (keeps the call valid)
        batch_block = b

    if operators is None:
        operators = build_operators(adj, alpha, w, d, w2, d2, t, f, x.dtype)
    adj_scaled, w_comb = operators

    # Block-diagonal adjacency only while the bb^2 FLOP growth is negligible.
    use_block_diag = batch_block <= 8
    if use_block_diag and batch_block > 1:
        a_op = jnp.kron(jnp.eye(batch_block, dtype=x.dtype), adj_scaled)
    else:
        a_op = adj_scaled
    kernel = _odeblock_kernel_blockdiag if use_block_diag else _odeblock_kernel_looped

    # lane-dense slabs: last dim = T*F (256 here) -> unmasked full-lane vld/vst
    x_l = x.reshape(b, n, tf)
    x0_l = x0.reshape(b, n, tf)

    # Slabs are double-buffered by the pipeline; only raise the scoped VMEM
    # limit when the default (~32 MiB) would actually be exceeded.
    item = x.dtype.itemsize
    bytes_needed = (2 * 3 * batch_block * n * tf * item
                    + (a_op.size + w_comb.size) * item
                    + (4 << 20))
    vmem_limit = int(bytes_needed) if bytes_needed > (32 << 20) else None

    out = pl.pallas_call(
        kernel,
        out_shape=jax.ShapeDtypeStruct((b, n, tf), x.dtype),
        grid_spec=pltpu.PrefetchScalarGridSpec(
            num_scalar_prefetch=0,
            grid=(b // batch_block,),
            in_specs=[
                pl.BlockSpec((batch_block, n, tf), lambda i: (i, 0, 0)),   # x
                pl.BlockSpec((batch_block, n, tf), lambda i: (i, 0, 0)),   # x0
                pl.BlockSpec(a_op.shape, lambda i: (0, 0)),                # A_bd / adj_scaled
                pl.BlockSpec((tf, tf), lambda i: (0, 0)),                  # W_comb - 2I
            ],
            out_specs=pl.BlockSpec((batch_block, n, tf), lambda i: (i, 0, 0)),
        ),
        compiler_params=pltpu.CompilerParams(
            dimension_semantics=("parallel",),
            vmem_limit_bytes=vmem_limit),
    )(x_l, x0_l, a_op, w_comb)

    return out.reshape(b, n, t, f)


def reference(x, x0, adj, alpha, w, d, w2, d2):
    """Pure-JAX mirror of the PyTorch ODEblock + STGODE ODEFunc (Euler, t=[0,1])."""
    a = jax.nn.sigmoid(alpha)[None, :, None, None]
    xa = jnp.einsum('ij,bjtf->bitf', adj, x, precision=HIGHEST)
    w_eff = jnp.dot(w * jnp.clip(d, 0.0, 1.0)[None, :], w.T, precision=HIGHEST)
    xw = jnp.einsum('bntf,fm->bntm', x, w_eff, precision=HIGHEST)
    w2_eff = jnp.dot(w2 * jnp.clip(d2, 0.0, 1.0)[None, :], w2.T, precision=HIGHEST)
    xw2 = jnp.einsum('bnkf,km->bnmf', x, w2_eff, precision=HIGHEST)
    fval = a / 2 * xa - x + xw - x + xw2 - x + x0
    return x + fval


if __name__ == "__main__":
    key = jax.random.PRNGKey(0)
    B, N, T, F = 2, 16, 8, 32
    ks = jax.random.split(key, 8)

    x = jax.random.normal(ks[0], (B, N, T, F), jnp.float32)
    x0 = x  # STGODE's ODEG calls set_x0(x) immediately before the block forward

    adj_raw = jax.random.uniform(ks[1], (N, N), jnp.float32)
    adj = adj_raw / jnp.sum(adj_raw, axis=1, keepdims=True)

    # Deterministic synthetic parameters (shapes from ODEFunc.__init__):
    alpha = 0.8 + 0.1 * jax.random.normal(ks[2], (N,), jnp.float32)
    w = jnp.eye(F, dtype=jnp.float32) + 0.05 * jax.random.normal(ks[3], (F, F), jnp.float32)
    d = jax.random.uniform(ks[4], (F,), jnp.float32, minval=-0.2, maxval=1.2)
    w2 = jnp.eye(T, dtype=jnp.float32) + 0.05 * jax.random.normal(ks[5], (T, T), jnp.float32)
    d2 = jax.random.uniform(ks[6], (T,), jnp.float32, minval=-0.2, maxval=1.2)

    out = jax.block_until_ready(odeblock_forward(x, x0, adj, alpha, w, d, w2, d2))
    ref = reference(x, x0, adj, alpha, w, d, w2, d2)

    assert out.shape == (B, N, T, F), out.shape
    max_err = float(jnp.max(jnp.abs(out - ref)))
    assert jnp.allclose(out, ref, atol=2e-4, rtol=2e-4), f"max_err={max_err}"
    print("KERNEL_OK")
</pallas_src>

<mosaic_0001>
module attributes {stable_mosaic.version = 11 : i64} {
  func.func @_odeblock_kernel_blockdiag(%arg0: i32, %arg1: memref<2x16x256xf32, #tpu.memory_space<vmem>>, %arg2: memref<2x16x256xf32, #tpu.memory_space<vmem>>, %arg3: memref<32x32xf32, #tpu.memory_space<vmem>>, %arg4: memref<256x256xf32, #tpu.memory_space<vmem>>, %arg5: memref<2x16x256xf32, #tpu.memory_space<vmem>>) attributes {dimension_semantics = [#tpu.dimension_semantics<parallel>], iteration_bounds = array<i64: 1>, scalar_prefetch = 0 : i64, scratch_operands = 0 : i64, tpu.core_type = #tpu.core_type<tc>, window_params = [{transform_indices = @transform_0, window_bounds = array<i64: 2, 16, 256>}, {transform_indices = @transform_1, window_bounds = array<i64: 2, 16, 256>}, {pipeline_mode = #tpu.pipeline_mode<synchronous>, transform_indices = @transform_2, window_bounds = array<i64: 32, 32>}, {pipeline_mode = #tpu.pipeline_mode<synchronous>, transform_indices = @transform_3, window_bounds = array<i64: 256, 256>}, {transform_indices = @transform_4, window_bounds = array<i64: 2, 16, 256>}]} {
    %c0 = arith.constant 0 : index
    %c0_0 = arith.constant 0 : index
    %c0_1 = arith.constant 0 : index
    %0 = vector.load %arg1[%c0, %c0_0, %c0_1] : memref<2x16x256xf32, #tpu.memory_space<vmem>>, vector<2x16x256xf32>
    %1 = vector.shape_cast %0 : vector<2x16x256xf32> to vector<32x256xf32>
    %c0_2 = arith.constant 0 : index
    %c0_3 = arith.constant 0 : index
    %2 = vector.load %arg4[%c0_2, %c0_3] : memref<256x256xf32, #tpu.memory_space<vmem>>, vector<256x256xf32>
    %cst = arith.constant dense<0.000000e+00> : vector<32x256xf32>
    %3 = tpu.matmul %1, %2, %cst {dimension_numbers = #tpu.dot_dimension_numbers<[1], [0], [0], [1], [0, 0, 1, 1], [], []>, precision = #tpu.contract_precision<fp32>} : vector<32x256xf32>, vector<256x256xf32>, vector<32x256xf32> -> vector<32x256xf32>
    %c0_4 = arith.constant 0 : index
    %c0_5 = arith.constant 0 : index
    %4 = vector.load %arg3[%c0_4, %c0_5] : memref<32x32xf32, #tpu.memory_space<vmem>>, vector<32x32xf32>
    %cst_6 = arith.constant dense<0.000000e+00> : vector<32x256xf32>
    %5 = tpu.matmul %4, %1, %cst_6 {dimension_numbers = #tpu.dot_dimension_numbers<[1], [0], [0], [1], [0, 0, 1, 1], [], []>, precision = #tpu.contract_precision<fp32>} : vector<32x32xf32>, vector<32x256xf32>, vector<32x256xf32> -> vector<32x256xf32>
    %6 = arith.addf %5, %3 : vector<32x256xf32>
    %c0_7 = arith.constant 0 : index
    %c0_8 = arith.constant 0 : index
    %c0_9 = arith.constant 0 : index
    %7 = vector.load %arg2[%c0_7, %c0_8, %c0_9] : memref<2x16x256xf32, #tpu.memory_space<vmem>>, vector<2x16x256xf32>
    %8 = vector.shape_cast %7 : vector<2x16x256xf32> to vector<32x256xf32>
    %9 = arith.addf %6, %8 : vector<32x256xf32>
    %10 = vector.shape_cast %9 : vector<32x256xf32> to vector<2x16x256xf32>
    %c0_10 = arith.constant 0 : index
    %c0_11 = arith.constant 0 : index
    %c0_12 = arith.constant 0 : index
    %11 = vector.load %arg5[%c0_10, %c0_11, %c0_12] : memref<2x16x256xf32, #tpu.memory_space<vmem>>, vector<2x16x256xf32>
    tpu.vector_store %arg5[%c0_10, %c0_11, %c0_12], %10 {strides = array<i32>} : memref<2x16x256xf32, #tpu.memory_space<vmem>>, vector<2x16x256xf32>,
    return
  }
  func.func @transform_0(%arg0: i32) -> (i32, i32, i32) {
    %c0_i32 = arith.constant 0 : i32
    %c0_i32_0 = arith.constant 0 : i32
    %c0_i32_1 = arith.constant 0 : i32
    return %arg0, %c0_i32, %c0_i32_0 : i32, i32, i32
  }
  func.func @transform_1(%arg0: i32) -> (i32, i32, i32) {
    %c0_i32 = arith.constant 0 : i32
    %c0_i32_0 = arith.constant 0 : i32
    %c0_i32_1 = arith.constant 0 : i32
    return %arg0, %c0_i32, %c0_i32_0 : i32, i32, i32
  }
  func.func @transform_2(%arg0: i32) -> (i32, i32) {
    %c0_i32 = arith.constant 0 : i32
    %c0_i32_0 = arith.constant 0 : i32
    %c0_i32_1 = arith.constant 0 : i32
    return %c0_i32, %c0_i32_0 : i32, i32
  }
  func.func @transform_3(%arg0: i32) -> (i32, i32) {
    %c0_i32 = arith.constant 0 : i32
    %c0_i32_0 = arith.constant 0 : i32
    %c0_i32_1 = arith.constant 0 : i32
    return %c0_i32, %c0_i32_0 : i32, i32
  }
  func.func @transform_4(%arg0: i32) -> (i32, i32, i32) {
    %c0_i32 = arith.constant 0 : i32
    %c0_i32_0 = arith.constant 0 : i32
    %c0_i32_1 = arith.constant 0 : i32
    return %arg0, %c0_i32, %c0_i32_0 : i32, i32, i32
  }
}

</mosaic_0001>

<llo_original>
// kernel: tpu_custom_call.1
$region0: #{tpu_custom_call.1}
  #allocation0 [shape = 'u32[]', space=smem, size = 0x4, offset = 0x4, fixed_abs, tag = 'smem constant byte address 0x4 - core index']
  #allocation1 [shape = 'u32[72,128]{1,0:T(1,128)}', space=vmem, size = 0x9000, scoped, tag = 'internal scratch']
  %s0 = inlined_call_operand.hbm [shape: f32[2,16,256], index: 0, kind: input, shape index: {}]
  %s1 = inlined_call_operand.hbm [shape: f32[2,16,256], index: 1, kind: input, shape index: {}]
  %s2 = inlined_call_operand.hbm [shape: f32[32,32], index: 2, kind: input, shape index: {}]
  %s3 = inlined_call_operand.hbm [shape: f32[256,256], index: 3, kind: input, shape index: {}]
  %s4 = inlined_call_operand.hbm [shape: f32[2,16,256], index: 4, kind: output, shape index: {}]
  %s5 = sld [smem:[#allocation0]]
  $region42: #{tpu_custom_call.1} parent=0
    _
  %s7 = ssub.s32 1, %s5
  %s8 = scalar_select 0, %s7, %s5
  $region1: #{tpu_custom_call.1} parent=0
    #allocation2 [shape = 'u8[32768]{0}', space=vmem, size = 0x8000, scoped, tag = 'input window, operand 0, single buffered']
    #allocation3 [shape = 's32[1]{0}', space=sflag, size = 0x4, scoped, tag = 'scoped memory for tpu_custom_call.1']
    #allocation4 [shape = 's32[1]{0}', space=sflag, size = 0x4, scoped, tag = 'scoped memory for tpu_custom_call.1']
    #allocation5 [shape = 'u8[32768]{0}', space=vmem, size = 0x8000, scoped, tag = 'input window, operand 1, single buffered']
    #allocation6 [shape = 's32[1]{0}', space=sflag, size = 0x4, scoped, tag = 'scoped memory for tpu_custom_call.1']
    #allocation7 [shape = 'u8[16384]{0}', space=vmem, size = 0x4000, scoped, tag = 'input window, operand 2, single buffered']
    #allocation8 [shape = 'u8[262144]{0}', space=vmem, size = 0x40000, scoped, tag = 'input window, operand 3, single buffered']
    #allocation9 [shape = 's32[1]{0}', space=sflag, size = 0x4, scoped, tag = 'scoped memory for tpu_custom_call.1']
    #allocation10 [shape = 'u8[32768]{0}', space=vmem, size = 0x8000, scoped, tag = 'output window, operand 0, single buffered']
    %9 = vsyncpa [#allocation3], 0
    %10 = vsyncpa [#allocation6], 0
    %11 = vsyncpa [#allocation9], 0
    %12 = vsyncpa [#allocation4], 0
    // Predicated region
    $region2: #{tpu_custom_call.1} parent=1 // pred_check
      _
    $region3: #{tpu_custom_call.1} parent=1 // pred_check_branch
      %14 = sbr.rel (0) target = $region5
    $region4: #{tpu_custom_call.1} parent=1 // pred_region
      %16 = vsyncadd [#allocation3], 0
      %s17 = sshll.u32 %s0, 4
      %s18 = int_to_ptr.hbm [resolvable:$true] %s17
      %s19 = sshll.u32 [#allocation2], 4
      %s20 = int_to_ptr.vmem [resolvable:$true] %s19
      %25 = dma.hbm_to_vmem [thread:$0]  %s18, 1024, %s20, [#allocation3], 256, 256, 16
    $region5: #{tpu_custom_call.1} parent=1 // pred_fallthru
      _
    // Predicated region
    $region6: #{tpu_custom_call.1} parent=1 // pred_check
      _
    $region7: #{tpu_custom_call.1} parent=1 // pred_check_branch
      %27 = sbr.rel (0) target = $region9
    $region8: #{tpu_custom_call.1} parent=1 // pred_region
      %29 = vsyncadd [#allocation6], 0
      %s30 = sshll.u32 %s1, 4
      %s31 = int_to_ptr.hbm [resolvable:$true] %s30
      %s32 = sshll.u32 [#allocation5], 4
      %s33 = int_to_ptr.vmem [resolvable:$true] %s32
      %38 = dma.hbm_to_vmem [thread:$0]  %s31, 1024, %s33, [#allocation6], 256, 256, 16
    $region9: #{tpu_custom_call.1} parent=1 // pred_fallthru
      _
    // Predicated region
    $region10: #{tpu_custom_call.1} parent=1 // pred_check
      _
    $region11: #{tpu_custom_call.1} parent=1 // pred_check_branch
      %40 = sbr.rel (0) target = $region13
    $region12: #{tpu_custom_call.1} parent=1 // pred_region
      %42 = vsyncadd [#allocation6], 0
      %s43 = sshll.u32 %s2, 4
      %s44 = int_to_ptr.hbm [resolvable:$true] %s43
      %s45 = sshll.u32 [#allocation7], 4
      %s46 = int_to_ptr.vmem [resolvable:$true] %s45
      %51 = dma.hbm_to_vmem [thread:$0]  %s44, 512, %s46, [#allocation6], 128, 128, 8
    $region13: #{tpu_custom_call.1} parent=1 // pred_fallthru
      _
    // Predicated region
    $region14: #{tpu_custom_call.1} parent=1 // pred_check
      _
    $region15: #{tpu_custom_call.1} parent=1 // pred_check_branch
      %53 = sbr.rel (0) target = $region17
    $region16: #{tpu_custom_call.1} parent=1 // pred_region
      %55 = vsyncadd [#allocation9], 0
      %s56 = sshll.u32 %s3, 4
      %s57 = int_to_ptr.hbm [resolvable:$true] %s56
      %s58 = sshll.u32 [#allocation8], 4
      %s59 = int_to_ptr.vmem [resolvable:$true] %s58
      %64 = dma.hbm_to_vmem [thread:$0]  %s57, 8192, %s59, [#allocation9], 256, 256, 16
    $region17: #{tpu_custom_call.1} parent=1 // pred_fallthru
      _
    // Predicated region
    $region18: #{tpu_custom_call.1} parent=1 // pred_check
      _
    $region19: #{tpu_custom_call.1} parent=1 // pred_check_branch
      %66 = sbr.rel (0) target = $region21
    $region20: #{tpu_custom_call.1} parent=1 // pred_region
      %68 = dma.done [#allocation3], 1024
    $region21: #{tpu_custom_call.1} parent=1 // pred_fallthru
      _
    // Predicated region
    $region22: #{tpu_custom_call.1} parent=1 // pred_check
      _
    $region23: #{tpu_custom_call.1} parent=1 // pred_check_branch
      %70 = sbr.rel (0) target = $region25
    $region24: #{tpu_custom_call.1} parent=1 // pred_region
      %72 = dma.done [#allocation6], 1024
    $region25: #{tpu_custom_call.1} parent=1 // pred_fallthru
      _
    // Predicated region
    $region26: #{tpu_custom_call.1} parent=1 // pred_check
      _
    $region27: #{tpu_custom_call.1} parent=1 // pred_check_branch
      %74 = sbr.rel (0) target = $region29
    $region28: #{tpu_custom_call.1} parent=1 // pred_region
      %76 = dma.done [#allocation6], 512
    $region29: #{tpu_custom_call.1} parent=1 // pred_fallthru
      _
    // Predicated region
    $region30: #{tpu_custom_call.1} parent=1 // pred_check
      _
    $region31: #{tpu_custom_call.1} parent=1 // pred_check_branch
      %78 = sbr.rel (0) target = $region33
    $region32: #{tpu_custom_call.1} parent=1 // pred_region
      %80 = dma.done [#allocation9], 8192
    $region33: #{tpu_custom_call.1} parent=1 // pred_fallthru
      _
    %v81 = vld [vmem:[#allocation2] sm:$0xff]
    %v82 = vld [vmem:[#allocation2 + $0x8] sm:$0xff]
    %v83 = vld [vmem:[#allocation2 + $0x10] sm:$0xff]
    %v84 = vld [vmem:[#allocation2 + $0x18] sm:$0xff]
    %v85 = vld [vmem:[#allocation2 + $0x20] sm:$0xff]
    %v86 = vld [vmem:[#allocation2 + $0x28] sm:$0xff]
    %v87 = vld [vmem:[#allocation2 + $0x30] sm:$0xff]
    %v88 = vld [vmem:[#allocation2 + $0x38] sm:$0xff]
    %v89 = vld [vmem:[#allocation8] sm:$0xff]
    %v90 = vld [vmem:[#allocation8 + $0x8] sm:$0xff]
    %v91 = vld [vmem:[#allocation8 + $0x10] sm:$0xff]
    %v92 = vld [vmem:[#allocation8 + $0x18] sm:$0xff]
    %v93 = vld [vmem:[#allocation8 + $0x20] sm:$0xff]
    %v94 = vld [vmem:[#allocation8 + $0x28] sm:$0xff]
    %v95 = vld [vmem:[#allocation8 + $0x30] sm:$0xff]
    %v96 = vld [vmem:[#allocation8 + $0x38] sm:$0xff]
    %v97 = vld [vmem:[#allocation8 + $0x40] sm:$0xff]
    %v98 = vld [vmem:[#allocation8 + $0x48] sm:$0xff]
    %v99 = vld [vmem:[#allocation8 + $0x50] sm:$0xff]
    %v100 = vld [vmem:[#allocation8 + $0x58] sm:$0xff]
    %v101 = vld [vmem:[#allocation8 + $0x60] sm:$0xff]
    %v102 = vld [vmem:[#allocation8 + $0x68] sm:$0xff]
    %v103 = vld [vmem:[#allocation8 + $0x70] sm:$0xff]
    %v104 = vld [vmem:[#allocation8 + $0x78] sm:$0xff]
    %v105 = vld [vmem:[#allocation8 + $0x80] sm:$0xff]
    %v106 = vld [vmem:[#allocation8 + $0x88] sm:$0xff]
    %v107 = vld [vmem:[#allocation8 + $0x90] sm:$0xff]
    %v108 = vld [vmem:[#allocation8 + $0x98] sm:$0xff]
    %v109 = vld [vmem:[#allocation8 + $0xa0] sm:$0xff]
    %v110 = vld [vmem:[#allocation8 + $0xa8] sm:$0xff]
    %v111 = vld [vmem:[#allocation8 + $0xb0] sm:$0xff]
    %v112 = vld [vmem:[#allocation8 + $0xb8] sm:$0xff]
    %v113 = vld [vmem:[#allocation8 + $0xc0] sm:$0xff]
    %v114 = vld [vmem:[#allocation8 + $0xc8] sm:$0xff]
    %v115 = vld [vmem:[#allocation8 + $0xd0] sm:$0xff]
    %v116 = vld [vmem:[#allocation8 + $0xd8] sm:$0xff]
    %v117 = vld [vmem:[#allocation8 + $0xe0] sm:$0xff]
    %v118 = vld [vmem:[#allocation8 + $0xe8] sm:$0xff]
    %v119 = vld [vmem:[#allocation8 + $0xf0] sm:$0xff]
    %v120 = vld [vmem:[#allocation8 + $0xf8] sm:$0xff]
    %v121 = vld [vmem:[#allocation8 + $0x100] sm:$0xff]
    %v122 = vld [vmem:[#allocation8 + $0x108] sm:$0xff]
    %v123 = vld [vmem:[#allocation8 + $0x110] sm:$0xff]
    %v124 = vld [vmem:[#allocation8 + $0x118] sm:$0xff]
    %v125 = vld [vmem:[#allocation8 + $0x120] sm:$0xff]
    %v126 = vld [vmem:[#allocation8 + $0x128] sm:$0xff]
    %v127 = vld [vmem:[#allocation8 + $0x130] sm:$0xff]
    %v128 = vld [vmem:[#allocation8 + $0x138] sm:$0xff]
    %v129 = vld [vmem:[#allocation8 + $0x140] sm:$0xff]
    %v130 = vld [vmem:[#allocation8 + $0x148] sm:$0xff]
    %v131 = vld [vmem:[#allocation8 + $0x150] sm:$0xff]
    %v132 = vld [vmem:[#allocation8 + $0x158] sm:$0xff]
    %v133 = vld [vmem:[#allocation8 + $0x160] sm:$0xff]
    %v134 = vld [vmem:[#allocation8 + $0x168] sm:$0xff]
    %v135 = vld [vmem:[#allocation8 + $0x170] sm:$0xff]
    %v136 = vld [vmem:[#allocation8 + $0x178] sm:$0xff]
    %v137 = vld [vmem:[#allocation8 + $0x180] sm:$0xff]
    %v138 = vld [vmem:[#allocation8 + $0x188] sm:$0xff]
    %v139 = vld [vmem:[#allocation8 + $0x190] sm:$0xff]
    %v140 = vld [vmem:[#allocation8 + $0x198] sm:$0xff]
    %v141 = vld [vmem:[#allocation8 + $0x1a0] sm:$0xff]
    %v142 = vld [vmem:[#allocation8 + $0x1a8] sm:$0xff]
    %v143 = vld [vmem:[#allocation8 + $0x1b0] sm:$0xff]
    %v144 = vld [vmem:[#allocation8 + $0x1b8] sm:$0xff]
    %v145 = vld [vmem:[#allocation8 + $0x1c0] sm:$0xff]
    %v146 = vld [vmem:[#allocation8 + $0x1c8] sm:$0xff]
    %v147 = vld [vmem:[#allocation8 + $0x1d0] sm:$0xff]
    %v148 = vld [vmem:[#allocation8 + $0x1d8] sm:$0xff]
    %v149 = vld [vmem:[#allocation8 + $0x1e0] sm:$0xff]
    %v150 = vld [vmem:[#allocation8 + $0x1e8] sm:$0xff]
    %v151 = vld [vmem:[#allocation8 + $0x1f0] sm:$0xff]
    %v152 = vld [vmem:[#allocation8 + $0x1f8] sm:$0xff]
    %v153 = vand.u32 %v119, 4294901760
    %154 = vmatpush.msra.mxu0 %v153
    %v155 = vand.u32 %v117, 4294901760
    %156 = vmatpush.msra.mxu0 %v155
    %v157 = vand.u32 %v115, 4294901760
    %158 = vmatpush.msra.mxu0 %v157
    %v159 = vand.u32 %v113, 4294901760
    %160 = vmatpush.msra.mxu0 %v159
    %v161 = vand.u32 %v111, 4294901760
    %162 = vmatpush.msra.mxu0 %v161
    %v163 = vand.u32 %v109, 4294901760
    %164 = vmatpush.msra.mxu0 %v163
    %v165 = vand.u32 %v107, 4294901760
    %166 = vmatpush.msra.mxu0 %v165
    %v167 = vand.u32 %v105, 4294901760
    %168 = vmatpush.msra.mxu0 %v167
    %v169 = vand.u32 %v103, 4294901760
    %170 = vmatpush.msra.mxu0 %v169
    %v171 = vand.u32 %v101, 4294901760
    %172 = vmatpush.msra.mxu0 %v171
    %v173 = vand.u32 %v99, 4294901760
    %174 = vmatpush.msra.mxu0 %v173
    %v175 = vand.u32 %v97, 4294901760
    %176 = vmatpush.msra.mxu0 %v175
    %v177 = vand.u32 %v95, 4294901760
    %178 = vmatpush.msra.mxu0 %v177
    %v179 = vand.u32 %v93, 4294901760
    %180 = vmatpush.msra.mxu0 %v179
    %v181 = vand.u32 %v91, 4294901760
    %182 = vmatpush.msra.mxu0 %v181
    %v183 = vand.u32 %v89, 4294901760
    %184 = vmatpush.msra.mxu0 %v183
    %v185 = vand.u32 %v81, 4294901760
    %v186 = vsub.f32 %v81, %v185
    %v187 = vand.u32 %v186, 4294901760
    %v188 = vsub.f32 %v186, %v187
    %v189 = vand.u32 %v188, 4294901760
    %190 = vmatmul.f32.gmra.mxu0 %v189
    %v191 = vpop.f32.mrf.mxu0
    %v192 = vadd.f32 0.0, %v191
    %v193 = vand.u32 %v83, 4294901760
    %v194 = vsub.f32 %v83, %v193
    %v195 = vand.u32 %v194, 4294901760
    %v196 = vsub.f32 %v194, %v195
    %v197 = vand.u32 %v196, 4294901760
    %198 = vmatmul.f32.gmra.mxu0 %v197
    %v199 = vpop.f32.mrf.mxu0
    %v200 = vadd.f32 0.0, %v199
    %v201 = vand.u32 %v85, 4294901760
    %v202 = vsub.f32 %v85, %v201
    %v203 = vand.u32 %v202, 4294901760
    %v204 = vsub.f32 %v202, %v203
    %v205 = vand.u32 %v204, 4294901760
    %206 = vmatmul.f32.gmra.mxu0 %v205
    %v207 = vpop.f32.mrf.mxu0
    %v208 = vadd.f32 0.0, %v207
    %v209 = vand.u32 %v87, 4294901760
    %v210 = vsub.f32 %v87, %v209
    %v211 = vand.u32 %v210, 4294901760
    %v212 = vsub.f32 %v210, %v211
    %v213 = vand.u32 %v212, 4294901760
    %214 = vmatmul.f32.gmra.mxu0 %v213
    %v215 = vpop.f32.mrf.mxu0
    %v216 = vadd.f32 0.0, %v215
    %217 = vdwg.mxu0
    %v218 = vand.u32 %v119, 4294901760
    %v219 = vsub.f32 %v119, %v218
    %v220 = vand.u32 %v219, 4294901760
    %v221 = vsub.f32 %v219, %v220
    %v222 = vand.u32 %v221, 4294901760
    %223 = vmatpush.msra.mxu0 %v222
    %v224 = vand.u32 %v117, 4294901760
    %v225 = vsub.f32 %v117, %v224
    %v226 = vand.u32 %v225, 4294901760
    %v227 = vsub.f32 %v225, %v226
    %v228 = vand.u32 %v227, 4294901760
    %229 = vmatpush.msra.mxu0 %v228
    %v230 = vand.u32 %v115, 4294901760
    %v231 = vsub.f32 %v115, %v230
    %v232 = vand.u32 %v231, 4294901760
    %v233 = vsub.f32 %v231, %v232
    %v234 = vand.u32 %v233, 4294901760
    %235 = vmatpush.msra.mxu0 %v234
    %v236 = vand.u32 %v113, 4294901760
    %v237 = vsub.f32 %v113, %v236
    %v238 = vand.u32 %v237, 4294901760
    %v239 = vsub.f32 %v237, %v238
    %v240 = vand.u32 %v239, 4294901760
    %241 = vmatpush.msra.mxu0 %v240
    %v242 = vand.u32 %v111, 4294901760
    %v243 = vsub.f32 %v111, %v242
    %v244 = vand.u32 %v243, 4294901760
    %v245 = vsub.f32 %v243, %v244
    %v246 = vand.u32 %v245, 4294901760
    %247 = vmatpush.msra.mxu0 %v246
    %v248 = vand.u32 %v109, 4294901760
    %v249 = vsub.f32 %v109, %v248
    %v250 = vand.u32 %v249, 4294901760
    %v251 = vsub.f32 %v249, %v250
    %v252 = vand.u32 %v251, 4294901760
    %253 = vmatpush.msra.mxu0 %v252
    %v254 = vand.u32 %v107, 4294901760
    %v255 = vsub.f32 %v107, %v254
    %v256 = vand.u32 %v255, 4294901760
    %v257 = vsub.f32 %v255, %v256
    %v258 = vand.u32 %v257, 4294901760
    %259 = vmatpush.msra.mxu0 %v258
    %v260 = vand.u32 %v105, 4294901760
    %v261 = vsub.f32 %v105, %v260
    %v262 = vand.u32 %v261, 4294901760
    %v263 = vsub.f32 %v261, %v262
    %v264 = vand.u32 %v263, 4294901760
    %265 = vmatpush.msra.mxu0 %v264
    %v266 = vand.u32 %v103, 4294901760
    %v267 = vsub.f32 %v103, %v266
    %v268 = vand.u32 %v267, 4294901760
    %v269 = vsub.f32 %v267, %v268
    %v270 = vand.u32 %v269, 4294901760
    %271 = vmatpush.msra.mxu0 %v270
    %v272 = vand.u32 %v101, 4294901760
    %v273 = vsub.f32 %v101, %v272
    %v274 = vand.u32 %v273, 4294901760
    %v275 = vsub.f32 %v273, %v274
    %v276 = vand.u32 %v275, 4294901760
    %277 = vmatpush.msra.mxu0 %v276
    %v278 = vand.u32 %v99, 4294901760
    %v279 = vsub.f32 %v99, %v278
    %v280 = vand.u32 %v279, 4294901760
    %v281 = vsub.f32 %v279, %v280
    %v282 = vand.u32 %v281, 4294901760
    %283 = vmatpush.msra.mxu0 %v282
    %v284 = vand.u32 %v97, 4294901760
    %v285 = vsub.f32 %v97, %v284
    %v286 = vand.u32 %v285, 4294901760
    %v287 = vsub.f32 %v285, %v286
    %v288 = vand.u32 %v287, 4294901760
    %289 = vmatpush.msra.mxu0 %v288
    %v290 = vand.u32 %v95, 4294901760
    %v291 = vsub.f32 %v95, %v290
    %v292 = vand.u32 %v291, 4294901760
    %v293 = vsub.f32 %v291, %v292
    %v294 = vand.u32 %v293, 4294901760
    %295 = vmatpush.msra.mxu0 %v294
    %v296 = vand.u32 %v93, 4294901760
    %v297 = vsub.f32 %v93, %v296
    %v298 = vand.u32 %v297, 4294901760
    %v299 = vsub.f32 %v297, %v298
    %v300 = vand.u32 %v299, 4294901760
    %301 = vmatpush.msra.mxu0 %v300
    %v302 = vand.u32 %v91, 4294901760
    %v303 = vsub.f32 %v91, %v302
    %v304 = vand.u32 %v303, 4294901760
    %v305 = vsub.f32 %v303, %v304
    %v306 = vand.u32 %v305, 4294901760
    %307 = vmatpush.msra.mxu0 %v306
    %v308 = vand.u32 %v89, 4294901760
    %v309 = vsub.f32 %v89, %v308
    %v310 = vand.u32 %v309, 4294901760
    %v311 = vsub.f32 %v309, %v310
    %v312 = vand.u32 %v311, 4294901760
    %313 = vmatpush.msra.mxu0 %v312
    %v314 = vand.u32 %v81, 4294901760
    %315 = vmatmul.f32.gmra.mxu0 %v314
    %v316 = vpop.f32.mrf.mxu0
    %v317 = vadd.f32 %v192, %v316
    %v318 = vand.u32 %v83, 4294901760
    %319 = vmatmul.f32.gmra.mxu0 %v318
    %v320 = vpop.f32.mrf.mxu0
    %v321 = vadd.f32 %v200, %v320
    %v322 = vand.u32 %v85, 4294901760
    %323 = vmatmul.f32.gmra.mxu0 %v322
    %v324 = vpop.f32.mrf.mxu0
    %v325 = vadd.f32 %v208, %v324
    %v326 = vand.u32 %v87, 4294901760
    %327 = vmatmul.f32.gmra.mxu0 %v326
    %v328 = vpop.f32.mrf.mxu0
    %v329 = vadd.f32 %v216, %v328
    %330 = vdwg.mxu0
    %v331 = vand.u32 %v119, 4294901760
    %v332 = vsub.f32 %v119, %v331
    %333 = vmatpush.msra.mxu0 %v332
    %v334 = vand.u32 %v117, 4294901760
    %v335 = vsub.f32 %v117, %v334
    %336 = vmatpush.msra.mxu0 %v335
    %v337 = vand.u32 %v115, 4294901760
    %v338 = vsub.f32 %v115, %v337
    %339 = vmatpush.msra.mxu0 %v338
    %v340 = vand.u32 %v113, 4294901760
    %v341 = vsub.f32 %v113, %v340
    %342 = vmatpush.msra.mxu0 %v341
    %v343 = vand.u32 %v111, 4294901760
    %v344 = vsub.f32 %v111, %v343
    %345 = vmatpush.msra.mxu0 %v344
    %v346 = vand.u32 %v109, 4294901760
    %v347 = vsub.f32 %v109, %v346
    %348 = vmatpush.msra.mxu0 %v347
    %v349 = vand.u32 %v107, 4294901760
    %v350 = vsub.f32 %v107, %v349
    %351 = vmatpush.msra.mxu0 %v350
    %v352 = vand.u32 %v105, 4294901760
    %v353 = vsub.f32 %v105, %v352
    %354 = vmatpush.msra.mxu0 %v353
    %v355 = vand.u32 %v103, 4294901760
    %v356 = vsub.f32 %v103, %v355
    %357 = vmatpush.msra.mxu0 %v356
    %v358 = vand.u32 %v101, 4294901760
    %v359 = vsub.f32 %v101, %v358
    %360 = vmatpush.msra.mxu0 %v359
    %v361 = vand.u32 %v99, 4294901760
    %v362 = vsub.f32 %v99, %v361
    %363 = vmatpush.msra.mxu0 %v362
    %v364 = vand.u32 %v97, 4294901760
    %v365 = vsub.f32 %v97, %v364
    %366 = vmatpush.msra.mxu0 %v365
    %v367 = vand.u32 %v95, 4294901760
    %v368 = vsub.f32 %v95, %v367
    %369 = vmatpush.msra.mxu0 %v368
    %v370 = vand.u32 %v93, 4294901760
    %v371 = vsub.f32 %v93, %v370
    %372 = vmatpush.msra.mxu0 %v371
    %v373 = vand.u32 %v91, 4294901760
    %v374 = vsub.f32 %v91, %v373
    %375 = vmatpush.msra.mxu0 %v374
    %v376 = vand.u32 %v89, 4294901760
    %v377 = vsub.f32 %v89, %v376
    %378 = vmatpush.msra.mxu0 %v377
    %v379 = vand.u32 %v81, 4294901760
    %v380 = vsub.f32 %v81, %v379
    %381 = vmatmul.f32.gmra.mxu0 %v380
    %v382 = vpop.f32.mrf.mxu0
    %v383 = vadd.f32 %v317, %v382
    %v384 = vand.u32 %v83, 4294901760
    %v385 = vsub.f32 %v83, %v384
    %386 = vmatmul.f32.gmra.mxu0 %v385
    %v387 = vpop.f32.mrf.mxu0
    %v388 = vadd.f32 %v321, %v387
    %v389 = vand.u32 %v85, 4294901760
    %v390 = vsub.f32 %v85, %v389
    %391 = vmatmul.f32.gmra.mxu0 %v390
    %v392 = vpop.f32.mrf.mxu0
    %v393 = vadd.f32 %v325, %v392
    %v394 = vand.u32 %v87, 4294901760
    %v395 = vsub.f32 %v87, %v394
    %396 = vmatmul.f32.gmra.mxu0 %v395
    %v397 = vpop.f32.mrf.mxu0
    %v398 = vadd.f32 %v329, %v397
    %399 = vdwg.mxu0
    %v400 = vand.u32 %v119, 4294901760
    %401 = vmatpush.msra.mxu0 %v400
    %v402 = vand.u32 %v117, 4294901760
    %403 = vmatpush.msra.mxu0 %v402
    %v404 = vand.u32 %v115, 4294901760
    %405 = vmatpush.msra.mxu0 %v404
    %v406 = vand.u32 %v113, 4294901760
    %407 = vmatpush.msra.mxu0 %v406
    %v408 = vand.u32 %v111, 4294901760
    %409 = vmatpush.msra.mxu0 %v408
    %v410 = vand.u32 %v109, 4294901760
    %411 = vmatpush.msra.mxu0 %v410
    %v412 = vand.u32 %v107, 4294901760
    %413 = vmatpush.msra.mxu0 %v412
    %v414 = vand.u32 %v105, 4294901760
    %415 = vmatpush.msra.mxu0 %v414
    %v416 = vand.u32 %v103, 4294901760
    %417 = vmatpush.msra.mxu0 %v416
    %v418 = vand.u32 %v101, 4294901760
    %419 = vmatpush.msra.mxu0 %v418
    %v420 = vand.u32 %v99, 4294901760
    %421 = vmatpush.msra.mxu0 %v420
    %v422 = vand.u32 %v97, 4294901760
    %423 = vmatpush.msra.mxu0 %v422
    %v424 = vand.u32 %v95, 4294901760
    %425 = vmatpush.msra.mxu0 %v424
    %v426 = vand.u32 %v93, 4294901760
    %427 = vmatpush.msra.mxu0 %v426
    %v428 = vand.u32 %v91, 4294901760
    %429 = vmatpush.msra.mxu0 %v428
    %v430 = vand.u32 %v89, 4294901760
    %431 = vmatpush.msra.mxu0 %v430
    %v432 = vand.u32 %v81, 4294901760
    %v433 = vsub.f32 %v81, %v432
    %v434 = vand.u32 %v433, 4294901760
    %435 = vmatmul.f32.gmra.mxu0 %v434
    %v436 = vpop.f32.mrf.mxu0
    %v437 = vadd.f32 %v383, %v436
    %v438 = vand.u32 %v83, 4294901760
    %v439 = vsub.f32 %v83, %v438
    %v440 = vand.u32 %v439, 4294901760
    %441 = vmatmul.f32.gmra.mxu0 %v440
    %v442 = vpop.f32.mrf.mxu0
    %v443 = vadd.f32 %v388, %v442
    %v444 = vand.u32 %v85, 4294901760
    %v445 = vsub.f32 %v85, %v444
    %v446 = vand.u32 %v445, 4294901760
    %447 = vmatmul.f32.gmra.mxu0 %v446
    %v448 = vpop.f32.mrf.mxu0
    %v449 = vadd.f32 %v393, %v448
    %v450 = vand.u32 %v87, 4294901760
    %v451 = vsub.f32 %v87, %v450
    %v452 = vand.u32 %v451, 4294901760
    %453 = vmatmul.f32.gmra.mxu0 %v452
    %v454 = vpop.f32.mrf.mxu0
    %v455 = vadd.f32 %v398, %v454
    %456 = vdwg.mxu0
    %v457 = vand.u32 %v119, 4294901760
    %v458 = vsub.f32 %v119, %v457
    %v459 = vand.u32 %v458, 4294901760
    %460 = vmatpush.msra.mxu0 %v459
    %v461 = vand.u32 %v117, 4294901760
    %v462 = vsub.f32 %v117, %v461
    %v463 = vand.u32 %v462, 4294901760
    %464 = vmatpush.msra.mxu0 %v463
    %v465 = vand.u32 %v115, 4294901760
    %v466 = vsub.f32 %v115, %v465
    %v467 = vand.u32 %v466, 4294901760
    %468 = vmatpush.msra.mxu0 %v467
    %v469 = vand.u32 %v113, 4294901760
    %v470 = vsub.f32 %v113, %v469
    %v471 = vand.u32 %v470, 4294901760
    %472 = vmatpush.msra.mxu0 %v471
    %v473 = vand.u32 %v111, 4294901760
    %v474 = vsub.f32 %v111, %v473
    %v475 = vand.u32 %v474, 4294901760
    %476 = vmatpush.msra.mxu0 %v475
    %v477 = vand.u32 %v109, 4294901760
    %v478 = vsub.f32 %v109, %v477
    %v479 = vand.u32 %v478, 4294901760
    %480 = vmatpush.msra.mxu0 %v479
    %v481 = vand.u32 %v107, 4294901760
    %v482 = vsub.f32 %v107, %v481
    %v483 = vand.u32 %v482, 4294901760
    %484 = vmatpush.msra.mxu0 %v483
    %v485 = vand.u32 %v105, 4294901760
    %v486 = vsub.f32 %v105, %v485
    %v487 = vand.u32 %v486, 4294901760
    %488 = vmatpush.msra.mxu0 %v487
    %v489 = vand.u32 %v103, 4294901760
    %v490 = vsub.f32 %v103, %v489
    %v491 = vand.u32 %v490, 4294901760
    %492 = vmatpush.msra.mxu0 %v491
    %v493 = vand.u32 %v101, 4294901760
    %v494 = vsub.f32 %v101, %v493
    %v495 = vand.u32 %v494, 4294901760
    %496 = vmatpush.msra.mxu0 %v495
    %v497 = vand.u32 %v99, 4294901760
    %v498 = vsub.f32 %v99, %v497
    %v499 = vand.u32 %v498, 4294901760
    %500 = vmatpush.msra.mxu0 %v499
    %v501 = vand.u32 %v97, 4294901760
    %v502 = vsub.f32 %v97, %v501
    %v503 = vand.u32 %v502, 4294901760
    %504 = vmatpush.msra.mxu0 %v503
    %v505 = vand.u32 %v95, 4294901760
    %v506 = vsub.f32 %v95, %v505
    %v507 = vand.u32 %v506, 4294901760
    %508 = vmatpush.msra.mxu0 %v507
    %v509 = vand.u32 %v93, 4294901760
    %v510 = vsub.f32 %v93, %v509
    %v511 = vand.u32 %v510, 4294901760
    %512 = vmatpush.msra.mxu0 %v511
    %v513 = vand.u32 %v91, 4294901760
    %v514 = vsub.f32 %v91, %v513
    %v515 = vand.u32 %v514, 4294901760
    %516 = vmatpush.msra.mxu0 %v515
    %v517 = vand.u32 %v89, 4294901760
    %v518 = vsub.f32 %v89, %v517
    %v519 = vand.u32 %v518, 4294901760
    %520 = vmatpush.msra.mxu0 %v519
    %v521 = vand.u32 %v81, 4294901760
    %522 = vmatmul.f32.gmra.mxu0 %v521
    %v523 = vpop.f32.mrf.mxu0
    %v524 = vadd.f32 %v437, %v523
    %v525 = vand.u32 %v83, 4294901760
    %526 = vmatmul.f32.gmra.mxu0 %v525
    %v527 = vpop.f32.mrf.mxu0
    %v528 = vadd.f32 %v443, %v527
    %v529 = vand.u32 %v85, 4294901760
    %530 = vmatmul.f32.gmra.mxu0 %v529
    %v531 = vpop.f32.mrf.mxu0
    %v532 = vadd.f32 %v449, %v531
    %v533 = vand.u32 %v87, 4294901760
    %534 = vmatmul.f32.gmra.mxu0 %v533
    %v535 = vpop.f32.mrf.mxu0
    %v536 = vadd.f32 %v455, %v535
    %537 = vdwg.mxu0
    %v538 = vand.u32 %v119, 4294901760
    %539 = vmatpush.msra.mxu0 %v538
    %v540 = vand.u32 %v117, 4294901760
    %541 = vmatpush.msra.mxu0 %v540
    %v542 = vand.u32 %v115, 4294901760
    %543 = vmatpush.msra.mxu0 %v542
    %v544 = vand.u32 %v113, 4294901760
    %545 = vmatpush.msra.mxu0 %v544
    %v546 = vand.u32 %v111, 4294901760
    %547 = vmatpush.msra.mxu0 %v546
    %v548 = vand.u32 %v109, 4294901760
    %549 = vmatpush.msra.mxu0 %v548
    %v550 = vand.u32 %v107, 4294901760
    %551 = vmatpush.msra.mxu0 %v550
    %v552 = vand.u32 %v105, 4294901760
    %553 = vmatpush.msra.mxu0 %v552
    %v554 = vand.u32 %v103, 4294901760
    %555 = vmatpush.msra.mxu0 %v554
    %v556 = vand.u32 %v101, 4294901760
    %557 = vmatpush.msra.mxu0 %v556
    %v558 = vand.u32 %v99, 4294901760
    %559 = vmatpush.msra.mxu0 %v558
    %v560 = vand.u32 %v97, 4294901760
    %561 = vmatpush.msra.mxu0 %v560
    %v562 = vand.u32 %v95, 4294901760
    %563 = vmatpush.msra.mxu0 %v562
    %v564 = vand.u32 %v93, 4294901760
    %565 = vmatpush.msra.mxu0 %v564
    %v566 = vand.u32 %v91, 4294901760
    %567 = vmatpush.msra.mxu0 %v566
    %v568 = vand.u32 %v89, 4294901760
    %569 = vmatpush.msra.mxu0 %v568
    %v570 = vand.u32 %v81, 4294901760
    %571 = vmatmul.f32.gmra.mxu0 %v570
    %v572 = vpop.f32.mrf.mxu0
    %v573 = vadd.f32 %v524, %v572
    %v574 = vand.u32 %v83, 4294901760
    %575 = vmatmul.f32.gmra.mxu0 %v574
    %v576 = vpop.f32.mrf.mxu0
    %v577 = vadd.f32 %v528, %v576
    %v578 = vand.u32 %v85, 4294901760
    %579 = vmatmul.f32.gmra.mxu0 %v578
    %v580 = vpop.f32.mrf.mxu0
    %v581 = vadd.f32 %v532, %v580
    %v582 = vand.u32 %v87, 4294901760
    %583 = vmatmul.f32.gmra.mxu0 %v582
    %v584 = vpop.f32.mrf.mxu0
    %v585 = vadd.f32 %v536, %v584
    %586 = vdwg.mxu0
    %v587 = vand.u32 %v151, 4294901760
    %588 = vmatpush.msra.mxu0 %v587
    %v589 = vand.u32 %v149, 4294901760
    %590 = vmatpush.msra.mxu0 %v589
    %v591 = vand.u32 %v147, 4294901760
    %592 = vmatpush.msra.mxu0 %v591
    %v593 = vand.u32 %v145, 4294901760
    %594 = vmatpush.msra.mxu0 %v593
    %v595 = vand.u32 %v143, 4294901760
    %596 = vmatpush.msra.mxu0 %v595
    %v597 = vand.u32 %v141, 4294901760
    %598 = vmatpush.msra.mxu0 %v597
    %v599 = vand.u32 %v139, 4294901760
    %600 = vmatpush.msra.mxu0 %v599
    %v601 = vand.u32 %v137, 4294901760
    %602 = vmatpush.msra.mxu0 %v601
    %v603 = vand.u32 %v135, 4294901760
    %604 = vmatpush.msra.mxu0 %v603
    %v605 = vand.u32 %v133, 4294901760
    %606 = vmatpush.msra.mxu0 %v605
    %v607 = vand.u32 %v131, 4294901760
    %608 = vmatpush.msra.mxu0 %v607
    %v609 = vand.u32 %v129, 4294901760
    %610 = vmatpush.msra.mxu0 %v609
    %v611 = vand.u32 %v127, 4294901760
    %612 = vmatpush.msra.mxu0 %v611
    %v613 = vand.u32 %v125, 4294901760
    %614 = vmatpush.msra.mxu0 %v613
    %v615 = vand.u32 %v123, 4294901760
    %616 = vmatpush.msra.mxu0 %v615
    %v617 = vand.u32 %v121, 4294901760
    %618 = vmatpush.msra.mxu0 %v617
    %v619 = vand.u32 %v82, 4294901760
    %v620 = vsub.f32 %v82, %v619
    %v621 = vand.u32 %v620, 4294901760
    %v622 = vsub.f32 %v620, %v621
    %v623 = vand.u32 %v622, 4294901760
    %624 = vmatmul.f32.gmra.mxu0 %v623
    %v625 = vpop.f32.mrf.mxu0
    %v626 = vadd.f32 %v573, %v625
    %v627 = vand.u32 %v84, 4294901760
    %v628 = vsub.f32 %v84, %v627
    %v629 = vand.u32 %v628, 4294901760
    %v630 = vsub.f32 %v628, %v629
    %v631 = vand.u32 %v630, 4294901760
    %632 = vmatmul.f32.gmra.mxu0 %v631
    %v633 = vpop.f32.mrf.mxu0
    %v634 = vadd.f32 %v577, %v633
    %v635 = vand.u32 %v86, 4294901760
    %v636 = vsub.f32 %v86, %v635
    %v637 = vand.u32 %v636, 4294901760
    %v638 = vsub.f32 %v636, %v637
    %v639 = vand.u32 %v638, 4294901760
    %640 = vmatmul.f32.gmra.mxu0 %v639
    %v641 = vpop.f32.mrf.mxu0
    %v642 = vadd.f32 %v581, %v641
    %v643 = vand.u32 %v88, 4294901760
    %v644 = vsub.f32 %v88, %v643
    %v645 = vand.u32 %v644, 4294901760
    %v646 = vsub.f32 %v644, %v645
    %v647 = vand.u32 %v646, 4294901760
    %648 = vmatmul.f32.gmra.mxu0 %v647
    %v649 = vpop.f32.mrf.mxu0
    %v650 = vadd.f32 %v585, %v649
    %651 = vdwg.mxu0
    %v652 = vand.u32 %v151, 4294901760
    %v653 = vsub.f32 %v151, %v652
    %v654 = vand.u32 %v653, 4294901760
    %v655 = vsub.f32 %v653, %v654
    %v656 = vand.u32 %v655, 4294901760
    %657 = vmatpush.msra.mxu0 %v656
    %v658 = vand.u32 %v149, 4294901760
    %v659 = vsub.f32 %v149, %v658
    %v660 = vand.u32 %v659, 4294901760
    %v661 = vsub.f32 %v659, %v660
    %v662 = vand.u32 %v661, 4294901760
    %663 = vmatpush.msra.mxu0 %v662
    %v664 = vand.u32 %v147, 4294901760
    %v665 = vsub.f32 %v147, %v664
    %v666 = vand.u32 %v665, 4294901760
    %v667 = vsub.f32 %v665, %v666
    %v668 = vand.u32 %v667, 4294901760
    %669 = vmatpush.msra.mxu0 %v668
    %v670 = vand.u32 %v145, 4294901760
    %v671 = vsub.f32 %v145, %v670
    %v672 = vand.u32 %v671, 4294901760
    %v673 = vsub.f32 %v671, %v672
    %v674 = vand.u32 %v673, 4294901760
    %675 = vmatpush.msra.mxu0 %v674
    %v676 = vand.u32 %v143, 4294901760
    %v677 = vsub.f32 %v143, %v676
    %v678 = vand.u32 %v677, 4294901760
    %v679 = vsub.f32 %v677, %v678
    %v680 = vand.u32 %v679, 4294901760
    %681 = vmatpush.msra.mxu0 %v680
    %v682 = vand.u32 %v141, 4294901760
    %v683 = vsub.f32 %v141, %v682
    %v684 = vand.u32 %v683, 4294901760
    %v685 = vsub.f32 %v683, %v684
    %v686 = vand.u32 %v685, 4294901760
    %687 = vmatpush.msra.mxu0 %v686
    %v688 = vand.u32 %v139, 4294901760
    %v689 = vsub.f32 %v139, %v688
    %v690 = vand.u32 %v689, 4294901760
    %v691 = vsub.f32 %v689, %v690
    %v692 = vand.u32 %v691, 4294901760
    %693 = vmatpush.msra.mxu0 %v692
    %v694 = vand.u32 %v137, 4294901760
    %v695 = vsub.f32 %v137, %v694
    %v696 = vand.u32 %v695, 4294901760
    %v697 = vsub.f32 %v695, %v696
    %v698 = vand.u32 %v697, 4294901760
    %699 = vmatpush.msra.mxu0 %v698
    %v700 = vand.u32 %v135, 4294901760
    %v701 = vsub.f32 %v135, %v700
    %v702 = vand.u32 %v701, 4294901760
    %v703 = vsub.f32 %v701, %v702
    %v704 = vand.u32 %v703, 4294901760
    %705 = vmatpush.msra.mxu0 %v704
    %v706 = vand.u32 %v133, 4294901760
    %v707 = vsub.f32 %v133, %v706
    %v708 = vand.u32 %v707, 4294901760
    %v709 = vsub.f32 %v707, %v708
    %v710 = vand.u32 %v709, 4294901760
    %711 = vmatpush.msra.mxu0 %v710
    %v712 = vand.u32 %v131, 4294901760
    %v713 = vsub.f32 %v131, %v712
    %v714 = vand.u32 %v713, 4294901760
    %v715 = vsub.f32 %v713, %v714
    %v716 = vand.u32 %v715, 4294901760
    %717 = vmatpush.msra.mxu0 %v716
    %v718 = vand.u32 %v129, 4294901760
    %v719 = vsub.f32 %v129, %v718
    %v720 = vand.u32 %v719, 4294901760
    %v721 = vsub.f32 %v719, %v720
    %v722 = vand.u32 %v721, 4294901760
    %723 = vmatpush.msra.mxu0 %v722
    %v724 = vand.u32 %v127, 4294901760
    %v725 = vsub.f32 %v127, %v724
    %v726 = vand.u32 %v725, 4294901760
    %v727 = vsub.f32 %v725, %v726
    %v728 = vand.u32 %v727, 4294901760
    %729 = vmatpush.msra.mxu0 %v728
    %v730 = vand.u32 %v125, 4294901760
    %v731 = vsub.f32 %v125, %v730
    %v732 = vand.u32 %v731, 4294901760
    %v733 = vsub.f32 %v731, %v732
    %v734 = vand.u32 %v733, 4294901760
    %735 = vmatpush.msra.mxu0 %v734
    %v736 = vand.u32 %v123, 4294901760
    %v737 = vsub.f32 %v123, %v736
    %v738 = vand.u32 %v737, 4294901760
    %v739 = vsub.f32 %v737, %v738
    %v740 = vand.u32 %v739, 4294901760
    %741 = vmatpush.msra.mxu0 %v740
    %v742 = vand.u32 %v121, 4294901760
    %v743 = vsub.f32 %v121, %v742
    %v744 = vand.u32 %v743, 4294901760
    %v745 = vsub.f32 %v743, %v744
    %v746 = vand.u32 %v745, 4294901760
    %747 = vmatpush.msra.mxu0 %v746
    %v748 = vand.u32 %v82, 4294901760
    %749 = vmatmul.f32.gmra.mxu0 %v748
    %v750 = vpop.f32.mrf.mxu0
    %v751 = vadd.f32 %v626, %v750
    %v752 = vand.u32 %v84, 4294901760
    %753 = vmatmul.f32.gmra.mxu0 %v752
    %v754 = vpop.f32.mrf.mxu0
    %v755 = vadd.f32 %v634, %v754
    %v756 = vand.u32 %v86, 4294901760
    %757 = vmatmul.f32.gmra.mxu0 %v756
    %v758 = vpop.f32.mrf.mxu0
    %v759 = vadd.f32 %v642, %v758
    %v760 = vand.u32 %v88, 4294901760
    %761 = vmatmul.f32.gmra.mxu0 %v760
    %v762 = vpop.f32.mrf.mxu0
    %v763 = vadd.f32 %v650, %v762
    %764 = vdwg.mxu0
    %v765 = vand.u32 %v151, 4294901760
    %v766 = vsub.f32 %v151, %v765
    %767 = vmatpush.msra.mxu0 %v766
    %v768 = vand.u32 %v149, 4294901760
    %v769 = vsub.f32 %v149, %v768
    %770 = vmatpush.msra.mxu0 %v769
    %v771 = vand.u32 %v147, 4294901760
    %v772 = vsub.f32 %v147, %v771
    %773 = vmatpush.msra.mxu0 %v772
    %v774 = vand.u32 %v145, 4294901760
    %v775 = vsub.f32 %v145, %v774
    %776 = vmatpush.msra.mxu0 %v775
    %v777 = vand.u32 %v143, 4294901760
    %v778 = vsub.f32 %v143, %v777
    %779 = vmatpush.msra.mxu0 %v778
    %v780 = vand.u32 %v141, 4294901760
    %v781 = vsub.f32 %v141, %v780
    %782 = vmatpush.msra.mxu0 %v781
    %v783 = vand.u32 %v139, 4294901760
    %v784 = vsub.f32 %v139, %v783
    %785 = vmatpush.msra.mxu0 %v784
    %v786 = vand.u32 %v137, 4294901760
    %v787 = vsub.f32 %v137, %v786
    %788 = vmatpush.msra.mxu0 %v787
    %v789 = vand.u32 %v135, 4294901760
    %v790 = vsub.f32 %v135, %v789
    %791 = vmatpush.msra.mxu0 %v790
    %v792 = vand.u32 %v133, 4294901760
    %v793 = vsub.f32 %v133, %v792
    %794 = vmatpush.msra.mxu0 %v793
    %v795 = vand.u32 %v131, 4294901760
    %v796 = vsub.f32 %v131, %v795
    %797 = vmatpush.msra.mxu0 %v796
    %v798 = vand.u32 %v129, 4294901760
    %v799 = vsub.f32 %v129, %v798
    %800 = vmatpush.msra.mxu0 %v799
    %v801 = vand.u32 %v127, 4294901760
    %v802 = vsub.f32 %v127, %v801
    %803 = vmatpush.msra.mxu0 %v802
    %v804 = vand.u32 %v125, 4294901760
    %v805 = vsub.f32 %v125, %v804
    %806 = vmatpush.msra.mxu0 %v805
    %v807 = vand.u32 %v123, 4294901760
    %v808 = vsub.f32 %v123, %v807
    %809 = vmatpush.msra.mxu0 %v808
    %v810 = vand.u32 %v121, 4294901760
    %v811 = vsub.f32 %v121, %v810
    %812 = vmatpush.msra.mxu0 %v811
    %v813 = vand.u32 %v82, 4294901760
    %v814 = vsub.f32 %v82, %v813
    %815 = vmatmul.f32.gmra.mxu0 %v814
    %v816 = vpop.f32.mrf.mxu0
    %v817 = vadd.f32 %v751, %v816
    %v818 = vand.u32 %v84, 4294901760
    %v819 = vsub.f32 %v84, %v818
    %820 = vmatmul.f32.gmra.mxu0 %v819
    %v821 = vpop.f32.mrf.mxu0
    %v822 = vadd.f32 %v755, %v821
    %v823 = vand.u32 %v86, 4294901760
    %v824 = vsub.f32 %v86, %v823
    %825 = vmatmul.f32.gmra.mxu0 %v824
    %v826 = vpop.f32.mrf.mxu0
    %v827 = vadd.f32 %v759, %v826
    %v828 = vand.u32 %v88, 4294901760
    %v829 = vsub.f32 %v88, %v828
    %830 = vmatmul.f32.gmra.mxu0 %v829
    %v831 = vpop.f32.mrf.mxu0
    %v832 = vadd.f32 %v763, %v831
    %833 = vdwg.mxu0
    %v834 = vand.u32 %v151, 4294901760
    %835 = vmatpush.msra.mxu0 %v834
    %v836 = vand.u32 %v149, 4294901760
    %837 = vmatpush.msra.mxu0 %v836
    %v838 = vand.u32 %v147, 4294901760
    %839 = vmatpush.msra.mxu0 %v838
    %v840 = vand.u32 %v145, 4294901760
    %841 = vmatpush.msra.mxu0 %v840
    %v842 = vand.u32 %v143, 4294901760
    %843 = vmatpush.msra.mxu0 %v842
    %v844 = vand.u32 %v141, 4294901760
    %845 = vmatpush.msra.mxu0 %v844
    %v846 = vand.u32 %v139, 4294901760
    %847 = vmatpush.msra.mxu0 %v846
    %v848 = vand.u32 %v137, 4294901760
    %849 = vmatpush.msra.mxu0 %v848
    %v850 = vand.u32 %v135, 4294901760
    %851 = vmatpush.msra.mxu0 %v850
    %v852 = vand.u32 %v133, 4294901760
    %853 = vmatpush.msra.mxu0 %v852
    %v854 = vand.u32 %v131, 4294901760
    %855 = vmatpush.msra.mxu0 %v854
    %v856 = vand.u32 %v129, 4294901760
    %857 = vmatpush.msra.mxu0 %v856
    %v858 = vand.u32 %v127, 4294901760
    %859 = vmatpush.msra.mxu0 %v858
    %v860 = vand.u32 %v125, 4294901760
    %861 = vmatpush.msra.mxu0 %v860
    %v862 = vand.u32 %v123, 4294901760
    %863 = vmatpush.msra.mxu0 %v862
    %v864 = vand.u32 %v121, 4294901760
    %865 = vmatpush.msra.mxu0 %v864
    %v866 = vand.u32 %v82, 4294901760
    %v867 = vsub.f32 %v82, %v866
    %v868 = vand.u32 %v867, 4294901760
    %869 = vmatmul.f32.gmra.mxu0 %v868
    %v870 = vpop.f32.mrf.mxu0
    %v871 = vadd.f32 %v817, %v870
    %v872 = vand.u32 %v84, 4294901760
    %v873 = vsub.f32 %v84, %v872
    %v874 = vand.u32 %v873, 4294901760
    %875 = vmatmul.f32.gmra.mxu0 %v874
    %v876 = vpop.f32.mrf.mxu0
    %v877 = vadd.f32 %v822, %v876
    %v878 = vand.u32 %v86, 4294901760
    %v879 = vsub.f32 %v86, %v878
    %v880 = vand.u32 %v879, 4294901760
    %881 = vmatmul.f32.gmra.mxu0 %v880
    %v882 = vpop.f32.mrf.mxu0
    %v883 = vadd.f32 %v827, %v882
    %v884 = vand.u32 %v88, 4294901760
    %v885 = vsub.f32 %v88, %v884
    %v886 = vand.u32 %v885, 4294901760
    %887 = vmatmul.f32.gmra.mxu0 %v886
    %v888 = vpop.f32.mrf.mxu0
    %v889 = vadd.f32 %v832, %v888
    %890 = vdwg.mxu0
    %v891 = vand.u32 %v151, 4294901760
    %v892 = vsub.f32 %v151, %v891
    %v893 = vand.u32 %v892, 4294901760
    %894 = vmatpush.msra.mxu0 %v893
    %v895 = vand.u32 %v149, 4294901760
    %v896 = vsub.f32 %v149, %v895
    %v897 = vand.u32 %v896, 4294901760
    %898 = vmatpush.msra.mxu0 %v897
    %v899 = vand.u32 %v147, 4294901760
    %v900 = vsub.f32 %v147, %v899
    %v901 = vand.u32 %v900, 4294901760
    %902 = vmatpush.msra.mxu0 %v901
    %v903 = vand.u32 %v145, 4294901760
    %v904 = vsub.f32 %v145, %v903
    %v905 = vand.u32 %v904, 4294901760
    %906 = vmatpush.msra.mxu0 %v905
    %v907 = vand.u32 %v143, 4294901760
    %v908 = vsub.f32 %v143, %v907
    %v909 = vand.u32 %v908, 4294901760
    %910 = vmatpush.msra.mxu0 %v909
    %v911 = vand.u32 %v141, 4294901760
    %v912 = vsub.f32 %v141, %v911
    %v913 = vand.u32 %v912, 4294901760
    %914 = vmatpush.msra.mxu0 %v913
    %v915 = vand.u32 %v139, 4294901760
    %v916 = vsub.f32 %v139, %v915
    %v917 = vand.u32 %v916, 4294901760
    %918 = vmatpush.msra.mxu0 %v917
    %v919 = vand.u32 %v137, 4294901760
    %v920 = vsub.f32 %v137, %v919
    %v921 = vand.u32 %v920, 4294901760
    %922 = vmatpush.msra.mxu0 %v921
    %v923 = vand.u32 %v135, 4294901760
    %v924 = vsub.f32 %v135, %v923
    %v925 = vand.u32 %v924, 4294901760
    %926 = vmatpush.msra.mxu0 %v925
    %v927 = vand.u32 %v133, 4294901760
    %v928 = vsub.f32 %v133, %v927
    %v929 = vand.u32 %v928, 4294901760
    %930 = vmatpush.msra.mxu0 %v929
    %v931 = vand.u32 %v131, 4294901760
    %v932 = vsub.f32 %v131, %v931
    %v933 = vand.u32 %v932, 4294901760
    %934 = vmatpush.msra.mxu0 %v933
    %v935 = vand.u32 %v129, 4294901760
    %v936 = vsub.f32 %v129, %v935
    %v937 = vand.u32 %v936, 4294901760
    %938 = vmatpush.msra.mxu0 %v937
    %v939 = vand.u32 %v127, 4294901760
    %v940 = vsub.f32 %v127, %v939
    %v941 = vand.u32 %v940, 4294901760
    %942 = vmatpush.msra.mxu0 %v941
    %v943 = vand.u32 %v125, 4294901760
    %v944 = vsub.f32 %v125, %v943
    %v945 = vand.u32 %v944, 4294901760
    %946 = vmatpush.msra.mxu0 %v945
    %v947 = vand.u32 %v123, 4294901760
    %v948 = vsub.f32 %v123, %v947
    %v949 = vand.u32 %v948, 4294901760
    %950 = vmatpush.msra.mxu0 %v949
    %v951 = vand.u32 %v121, 4294901760
    %v952 = vsub.f32 %v121, %v951
    %v953 = vand.u32 %v952, 4294901760
    %954 = vmatpush.msra.mxu0 %v953
    %v955 = vand.u32 %v82, 4294901760
    %956 = vmatmul.f32.gmra.mxu0 %v955
    %v957 = vpop.f32.mrf.mxu0
    %v958 = vadd.f32 %v871, %v957
    %v959 = vand.u32 %v84, 4294901760
    %960 = vmatmul.f32.gmra.mxu0 %v959
    %v961 = vpop.f32.mrf.mxu0
    %v962 = vadd.f32 %v877, %v961
    %v963 = vand.u32 %v86, 4294901760
    %964 = vmatmul.f32.gmra.mxu0 %v963
    %v965 = vpop.f32.mrf.mxu0
    %v966 = vadd.f32 %v883, %v965
    %v967 = vand.u32 %v88, 4294901760
    %968 = vmatmul.f32.gmra.mxu0 %v967
    %v969 = vpop.f32.mrf.mxu0
    %v970 = vadd.f32 %v889, %v969
    %971 = vdwg.mxu0
    %v972 = vand.u32 %v151, 4294901760
    %973 = vmatpush.msra.mxu0 %v972
    %v974 = vand.u32 %v149, 4294901760
    %975 = vmatpush.msra.mxu0 %v974
    %v976 = vand.u32 %v147, 4294901760
    %977 = vmatpush.msra.mxu0 %v976
    %v978 = vand.u32 %v145, 4294901760
    %979 = vmatpush.msra.mxu0 %v978
    %v980 = vand.u32 %v143, 4294901760
    %981 = vmatpush.msra.mxu0 %v980
    %v982 = vand.u32 %v141, 4294901760
    %983 = vmatpush.msra.mxu0 %v982
    %v984 = vand.u32 %v139, 4294901760
    %985 = vmatpush.msra.mxu0 %v984
    %v986 = vand.u32 %v137, 4294901760
    %987 = vmatpush.msra.mxu0 %v986
    %v988 = vand.u32 %v135, 4294901760
    %989 = vmatpush.msra.mxu0 %v988
    %v990 = vand.u32 %v133, 4294901760
    %991 = vmatpush.msra.mxu0 %v990
    %v992 = vand.u32 %v131, 4294901760
    %993 = vmatpush.msra.mxu0 %v992
    %v994 = vand.u32 %v129, 4294901760
    %995 = vmatpush.msra.mxu0 %v994
    %v996 = vand.u32 %v127, 4294901760
    %997 = vmatpush.msra.mxu0 %v996
    %v998 = vand.u32 %v125, 4294901760
    %999 = vmatpush.msra.mxu0 %v998
    %v1000 = vand.u32 %v123, 4294901760
    %1001 = vmatpush.msra.mxu0 %v1000
    %v1002 = vand.u32 %v121, 4294901760
    %1003 = vmatpush.msra.mxu0 %v1002
    %v1004 = vand.u32 %v82, 4294901760
    %1005 = vmatmul.f32.gmra.mxu0 %v1004
    %v1006 = vpop.f32.mrf.mxu0
    %v1007 = vadd.f32 %v958, %v1006
    %v1008 = vand.u32 %v84, 4294901760
    %1009 = vmatmul.f32.gmra.mxu0 %v1008
    %v1010 = vpop.f32.mrf.mxu0
    %v1011 = vadd.f32 %v962, %v1010
    %v1012 = vand.u32 %v86, 4294901760
    %1013 = vmatmul.f32.gmra.mxu0 %v1012
    %v1014 = vpop.f32.mrf.mxu0
    %v1015 = vadd.f32 %v966, %v1014
    %v1016 = vand.u32 %v88, 4294901760
    %1017 = vmatmul.f32.gmra.mxu0 %v1016
    %v1018 = vpop.f32.mrf.mxu0
    %v1019 = vadd.f32 %v970, %v1018
    %1020 = vdwg.mxu0
    %v1021 = vand.u32 %v120, 4294901760
    %1022 = vmatpush.msra.mxu0 %v1021
    %v1023 = vand.u32 %v118, 4294901760
    %1024 = vmatpush.msra.mxu0 %v1023
    %v1025 = vand.u32 %v116, 4294901760
    %1026 = vmatpush.msra.mxu0 %v1025
    %v1027 = vand.u32 %v114, 4294901760
    %1028 = vmatpush.msra.mxu0 %v1027
    %v1029 = vand.u32 %v112, 4294901760
    %1030 = vmatpush.msra.mxu0 %v1029
    %v1031 = vand.u32 %v110, 4294901760
    %1032 = vmatpush.msra.mxu0 %v1031
    %v1033 = vand.u32 %v108, 4294901760
    %1034 = vmatpush.msra.mxu0 %v1033
    %v1035 = vand.u32 %v106, 4294901760
    %1036 = vmatpush.msra.mxu0 %v1035
    %v1037 = vand.u32 %v104, 4294901760
    %1038 = vmatpush.msra.mxu0 %v1037
    %v1039 = vand.u32 %v102, 4294901760
    %1040 = vmatpush.msra.mxu0 %v1039
    %v1041 = vand.u32 %v100, 4294901760
    %1042 = vmatpush.msra.mxu0 %v1041
    %v1043 = vand.u32 %v98, 4294901760
    %1044 = vmatpush.msra.mxu0 %v1043
    %v1045 = vand.u32 %v96, 4294901760
    %1046 = vmatpush.msra.mxu0 %v1045
    %v1047 = vand.u32 %v94, 4294901760
    %1048 = vmatpush.msra.mxu0 %v1047
    %v1049 = vand.u32 %v92, 4294901760
    %1050 = vmatpush.msra.mxu0 %v1049
    %v1051 = vand.u32 %v90, 4294901760
    %1052 = vmatpush.msra.mxu0 %v1051
    %v1053 = vand.u32 %v81, 4294901760
    %v1054 = vsub.f32 %v81, %v1053
    %v1055 = vand.u32 %v1054, 4294901760
    %v1056 = vsub.f32 %v1054, %v1055
    %v1057 = vand.u32 %v1056, 4294901760
    %1058 = vmatmul.f32.gmra.mxu0 %v1057
    %v1059 = vpop.f32.mrf.mxu0
    %v1060 = vadd.f32 0.0, %v1059
    %v1061 = vand.u32 %v83, 4294901760
    %v1062 = vsub.f32 %v83, %v1061
    %v1063 = vand.u32 %v1062, 4294901760
    %v1064 = vsub.f32 %v1062, %v1063
    %v1065 = vand.u32 %v1064, 4294901760
    %1066 = vmatmul.f32.gmra.mxu0 %v1065
    %v1067 = vpop.f32.mrf.mxu0
    %v1068 = vadd.f32 0.0, %v1067
    %v1069 = vand.u32 %v85, 4294901760
    %v1070 = vsub.f32 %v85, %v1069
    %v1071 = vand.u32 %v1070, 4294901760
    %v1072 = vsub.f32 %v1070, %v1071
    %v1073 = vand.u32 %v1072, 4294901760
    %1074 = vmatmul.f32.gmra.mxu0 %v1073
    %v1075 = vpop.f32.mrf.mxu0
    %v1076 = vadd.f32 0.0, %v1075
    %v1077 = vand.u32 %v87, 4294901760
    %v1078 = vsub.f32 %v87, %v1077
    %v1079 = vand.u32 %v1078, 4294901760
    %v1080 = vsub.f32 %v1078, %v1079
    %v1081 = vand.u32 %v1080, 4294901760
    %1082 = vmatmul.f32.gmra.mxu0 %v1081
    %v1083 = vpop.f32.mrf.mxu0
    %v1084 = vadd.f32 0.0, %v1083
    %1085 = vdwg.mxu0
    %v1086 = vand.u32 %v120, 4294901760
    %v1087 = vsub.f32 %v120, %v1086
    %v1088 = vand.u32 %v1087, 4294901760
    %v1089 = vsub.f32 %v1087, %v1088
    %v1090 = vand.u32 %v1089, 4294901760
    %1091 = vmatpush.msra.mxu0 %v1090
    %v1092 = vand.u32 %v118, 4294901760
    %v1093 = vsub.f32 %v118, %v1092
    %v1094 = vand.u32 %v1093, 4294901760
    %v1095 = vsub.f32 %v1093, %v1094
    %v1096 = vand.u32 %v1095, 4294901760
    %1097 = vmatpush.msra.mxu0 %v1096
    %v1098 = vand.u32 %v116, 4294901760
    %v1099 = vsub.f32 %v116, %v1098
    %v1100 = vand.u32 %v1099, 4294901760
    %v1101 = vsub.f32 %v1099, %v1100
    %v1102 = vand.u32 %v1101, 4294901760
    %1103 = vmatpush.msra.mxu0 %v1102
    %v1104 = vand.u32 %v114, 4294901760
    %v1105 = vsub.f32 %v114, %v1104
    %v1106 = vand.u32 %v1105, 4294901760
    %v1107 = vsub.f32 %v1105, %v1106
    %v1108 = vand.u32 %v1107, 4294901760
    %1109 = vmatpush.msra.mxu0 %v1108
    %v1110 = vand.u32 %v112, 4294901760
    %v1111 = vsub.f32 %v112, %v1110
    %v1112 = vand.u32 %v1111, 4294901760
    %v1113 = vsub.f32 %v1111, %v1112
    %v1114 = vand.u32 %v1113, 4294901760
    %1115 = vmatpush.msra.mxu0 %v1114
    %v1116 = vand.u32 %v110, 4294901760
    %v1117 = vsub.f32 %v110, %v1116
    %v1118 = vand.u32 %v1117, 4294901760
    %v1119 = vsub.f32 %v1117, %v1118
    %v1120 = vand.u32 %v1119, 4294901760
    %1121 = vmatpush.msra.mxu0 %v1120
    %v1122 = vand.u32 %v108, 4294901760
    %v1123 = vsub.f32 %v108, %v1122
    %v1124 = vand.u32 %v1123, 4294901760
    %v1125 = vsub.f32 %v1123, %v1124
    %v1126 = vand.u32 %v1125, 4294901760
    %1127 = vmatpush.msra.mxu0 %v1126
    %v1128 = vand.u32 %v106, 4294901760
    %v1129 = vsub.f32 %v106, %v1128
    %v1130 = vand.u32 %v1129, 4294901760
    %v1131 = vsub.f32 %v1129, %v1130
    %v1132 = vand.u32 %v1131, 4294901760
    %1133 = vmatpush.msra.mxu0 %v1132
    %v1134 = vand.u32 %v104, 4294901760
    %v1135 = vsub.f32 %v104, %v1134
    %v1136 = vand.u32 %v1135, 4294901760
    %v1137 = vsub.f32 %v1135, %v1136
    %v1138 = vand.u32 %v1137, 4294901760
    %1139 = vmatpush.msra.mxu0 %v1138
    %v1140 = vand.u32 %v102, 4294901760
    %v1141 = vsub.f32 %v102, %v1140
    %v1142 = vand.u32 %v1141, 4294901760
    %v1143 = vsub.f32 %v1141, %v1142
    %v1144 = vand.u32 %v1143, 4294901760
    %1145 = vmatpush.msra.mxu0 %v1144
    %v1146 = vand.u32 %v100, 4294901760
    %v1147 = vsub.f32 %v100, %v1146
    %v1148 = vand.u32 %v1147, 4294901760
    %v1149 = vsub.f32 %v1147, %v1148
    %v1150 = vand.u32 %v1149, 4294901760
    %1151 = vmatpush.msra.mxu0 %v1150
    %v1152 = vand.u32 %v98, 4294901760
    %v1153 = vsub.f32 %v98, %v1152
    %v1154 = vand.u32 %v1153, 4294901760
    %v1155 = vsub.f32 %v1153, %v1154
    %v1156 = vand.u32 %v1155, 4294901760
    %1157 = vmatpush.msra.mxu0 %v1156
    %v1158 = vand.u32 %v96, 4294901760
    %v1159 = vsub.f32 %v96, %v1158
    %v1160 = vand.u32 %v1159, 4294901760
    %v1161 = vsub.f32 %v1159, %v1160
    %v1162 = vand.u32 %v1161, 4294901760
    %1163 = vmatpush.msra.mxu0 %v1162
    %v1164 = vand.u32 %v94, 4294901760
    %v1165 = vsub.f32 %v94, %v1164
    %v1166 = vand.u32 %v1165, 4294901760
    %v1167 = vsub.f32 %v1165, %v1166
    %v1168 = vand.u32 %v1167, 4294901760
    %1169 = vmatpush.msra.mxu0 %v1168
    %v1170 = vand.u32 %v92, 4294901760
    %v1171 = vsub.f32 %v92, %v1170
    %v1172 = vand.u32 %v1171, 4294901760
    %v1173 = vsub.f32 %v1171, %v1172
    %v1174 = vand.u32 %v1173, 4294901760
    %1175 = vmatpush.msra.mxu0 %v1174
    %v1176 = vand.u32 %v90, 4294901760
    %v1177 = vsub.f32 %v90, %v1176
    %v1178 = vand.u32 %v1177, 4294901760
    %v1179 = vsub.f32 %v1177, %v1178
    %v1180 = vand.u32 %v1179, 4294901760
    %1181 = vmatpush.msra.mxu0 %v1180
    %v1182 = vand.u32 %v81, 4294901760
    %1183 = vmatmul.f32.gmra.mxu0 %v1182
    %v1184 = vpop.f32.mrf.mxu0
    %v1185 = vadd.f32 %v1060, %v1184
    %v1186 = vand.u32 %v83, 4294901760
    %1187 = vmatmul.f32.gmra.mxu0 %v1186
    %v1188 = vpop.f32.mrf.mxu0
    %v1189 = vadd.f32 %v1068, %v1188
    %v1190 = vand.u32 %v85, 4294901760
    %1191 = vmatmul.f32.gmra.mxu0 %v1190
    %v1192 = vpop.f32.mrf.mxu0
    %v1193 = vadd.f32 %v1076, %v1192
    %v1194 = vand.u32 %v87, 4294901760
    %1195 = vmatmul.f32.gmra.mxu0 %v1194
    %v1196 = vpop.f32.mrf.mxu0
    %v1197 = vadd.f32 %v1084, %v1196
    %1198 = vdwg.mxu0
    %v1199 = vand.u32 %v120, 4294901760
    %v1200 = vsub.f32 %v120, %v1199
    %1201 = vmatpush.msra.mxu0 %v1200
    %v1202 = vand.u32 %v118, 4294901760
    %v1203 = vsub.f32 %v118, %v1202
    %1204 = vmatpush.msra.mxu0 %v1203
    %v1205 = vand.u32 %v116, 4294901760
    %v1206 = vsub.f32 %v116, %v1205
    %1207 = vmatpush.msra.mxu0 %v1206
    %v1208 = vand.u32 %v114, 4294901760
    %v1209 = vsub.f32 %v114, %v1208
    %1210 = vmatpush.msra.mxu0 %v1209
    %v1211 = vand.u32 %v112, 4294901760
    %v1212 = vsub.f32 %v112, %v1211
    %1213 = vmatpush.msra.mxu0 %v1212
    %v1214 = vand.u32 %v110, 4294901760
    %v1215 = vsub.f32 %v110, %v1214
    %1216 = vmatpush.msra.mxu0 %v1215
    %v1217 = vand.u32 %v108, 4294901760
    %v1218 = vsub.f32 %v108, %v1217
    %1219 = vmatpush.msra.mxu0 %v1218
    %v1220 = vand.u32 %v106, 4294901760
    %v1221 = vsub.f32 %v106, %v1220
    %1222 = vmatpush.msra.mxu0 %v1221
    %v1223 = vand.u32 %v104, 4294901760
    %v1224 = vsub.f32 %v104, %v1223
    %1225 = vmatpush.msra.mxu0 %v1224
    %v1226 = vand.u32 %v102, 4294901760
    %v1227 = vsub.f32 %v102, %v1226
    %1228 = vmatpush.msra.mxu0 %v1227
    %v1229 = vand.u32 %v100, 4294901760
    %v1230 = vsub.f32 %v100, %v1229
    %1231 = vmatpush.msra.mxu0 %v1230
    %v1232 = vand.u32 %v98, 4294901760
    %v1233 = vsub.f32 %v98, %v1232
    %1234 = vmatpush.msra.mxu0 %v1233
    %v1235 = vand.u32 %v96, 4294901760
    %v1236 = vsub.f32 %v96, %v1235
    %1237 = vmatpush.msra.mxu0 %v1236
    %v1238 = vand.u32 %v94, 4294901760
    %v1239 = vsub.f32 %v94, %v1238
    %1240 = vmatpush.msra.mxu0 %v1239
    %v1241 = vand.u32 %v92, 4294901760
    %v1242 = vsub.f32 %v92, %v1241
    %1243 = vmatpush.msra.mxu0 %v1242
    %v1244 = vand.u32 %v90, 4294901760
    %v1245 = vsub.f32 %v90, %v1244
    %1246 = vmatpush.msra.mxu0 %v1245
    %v1247 = vand.u32 %v81, 4294901760
    %v1248 = vsub.f32 %v81, %v1247
    %1249 = vmatmul.f32.gmra.mxu0 %v1248
    %v1250 = vpop.f32.mrf.mxu0
    %v1251 = vadd.f32 %v1185, %v1250
    %v1252 = vand.u32 %v83, 4294901760
    %v1253 = vsub.f32 %v83, %v1252
    %1254 = vmatmul.f32.gmra.mxu0 %v1253
    %v1255 = vpop.f32.mrf.mxu0
    %v1256 = vadd.f32 %v1189, %v1255
    %v1257 = vand.u32 %v85, 4294901760
    %v1258 = vsub.f32 %v85, %v1257
    %1259 = vmatmul.f32.gmra.mxu0 %v1258
    %v1260 = vpop.f32.mrf.mxu0
    %v1261 = vadd.f32 %v1193, %v1260
    %v1262 = vand.u32 %v87, 4294901760
    %v1263 = vsub.f32 %v87, %v1262
    %1264 = vmatmul.f32.gmra.mxu0 %v1263
    %v1265 = vpop.f32.mrf.mxu0
    %v1266 = vadd.f32 %v1197, %v1265
    %1267 = vdwg.mxu0
    %v1268 = vand.u32 %v120, 4294901760
    %1269 = vmatpush.msra.mxu0 %v1268
    %v1270 = vand.u32 %v118, 4294901760
    %1271 = vmatpush.msra.mxu0 %v1270
    %v1272 = vand.u32 %v116, 4294901760
    %1273 = vmatpush.msra.mxu0 %v1272
    %v1274 = vand.u32 %v114, 4294901760
    %1275 = vmatpush.msra.mxu0 %v1274
    %v1276 = vand.u32 %v112, 4294901760
    %1277 = vmatpush.msra.mxu0 %v1276
    %v1278 = vand.u32 %v110, 4294901760
    %1279 = vmatpush.msra.mxu0 %v1278
    %v1280 = vand.u32 %v108, 4294901760
    %1281 = vmatpush.msra.mxu0 %v1280
    %v1282 = vand.u32 %v106, 4294901760
    %1283 = vmatpush.msra.mxu0 %v1282
    %v1284 = vand.u32 %v104, 4294901760
    %1285 = vmatpush.msra.mxu0 %v1284
    %v1286 = vand.u32 %v102, 4294901760
    %1287 = vmatpush.msra.mxu0 %v1286
    %v1288 = vand.u32 %v100, 4294901760
    %1289 = vmatpush.msra.mxu0 %v1288
    %v1290 = vand.u32 %v98, 4294901760
    %1291 = vmatpush.msra.mxu0 %v1290
    %v1292 = vand.u32 %v96, 4294901760
    %1293 = vmatpush.msra.mxu0 %v1292
    %v1294 = vand.u32 %v94, 4294901760
    %1295 = vmatpush.msra.mxu0 %v1294
    %v1296 = vand.u32 %v92, 4294901760
    %1297 = vmatpush.msra.mxu0 %v1296
    %v1298 = vand.u32 %v90, 4294901760
    %1299 = vmatpush.msra.mxu0 %v1298
    %v1300 = vand.u32 %v81, 4294901760
    %v1301 = vsub.f32 %v81, %v1300
    %v1302 = vand.u32 %v1301, 4294901760
    %1303 = vmatmul.f32.gmra.mxu0 %v1302
    %v1304 = vpop.f32.mrf.mxu0
    %v1305 = vadd.f32 %v1251, %v1304
    %v1306 = vand.u32 %v83, 4294901760
    %v1307 = vsub.f32 %v83, %v1306
    %v1308 = vand.u32 %v1307, 4294901760
    %1309 = vmatmul.f32.gmra.mxu0 %v1308
    %v1310 = vpop.f32.mrf.mxu0
    %v1311 = vadd.f32 %v1256, %v1310
    %v1312 = vand.u32 %v85, 4294901760
    %v1313 = vsub.f32 %v85, %v1312
    %v1314 = vand.u32 %v1313, 4294901760
    %1315 = vmatmul.f32.gmra.mxu0 %v1314
    %v1316 = vpop.f32.mrf.mxu0
    %v1317 = vadd.f32 %v1261, %v1316
    %v1318 = vand.u32 %v87, 4294901760
    %v1319 = vsub.f32 %v87, %v1318
    %v1320 = vand.u32 %v1319, 4294901760
    %1321 = vmatmul.f32.gmra.mxu0 %v1320
    %v1322 = vpop.f32.mrf.mxu0
    %v1323 = vadd.f32 %v1266, %v1322
    %1324 = vdwg.mxu0
    %v1325 = vand.u32 %v120, 4294901760
    %v1326 = vsub.f32 %v120, %v1325
    %v1327 = vand.u32 %v1326, 4294901760
    %1328 = vmatpush.msra.mxu0 %v1327
    %v1329 = vand.u32 %v118, 4294901760
    %v1330 = vsub.f32 %v118, %v1329
    %v1331 = vand.u32 %v1330, 4294901760
    %1332 = vmatpush.msra.mxu0 %v1331
    %v1333 = vand.u32 %v116, 4294901760
    %v1334 = vsub.f32 %v116, %v1333
    %v1335 = vand.u32 %v1334, 4294901760
    %1336 = vmatpush.msra.mxu0 %v1335
    %v1337 = vand.u32 %v114, 4294901760
    %v1338 = vsub.f32 %v114, %v1337
    %v1339 = vand.u32 %v1338, 4294901760
    %1340 = vmatpush.msra.mxu0 %v1339
    %v1341 = vand.u32 %v112, 4294901760
    %v1342 = vsub.f32 %v112, %v1341
    %v1343 = vand.u32 %v1342, 4294901760
    %1344 = vmatpush.msra.mxu0 %v1343
    %v1345 = vand.u32 %v110, 4294901760
    %v1346 = vsub.f32 %v110, %v1345
    %v1347 = vand.u32 %v1346, 4294901760
    %1348 = vmatpush.msra.mxu0 %v1347
    %v1349 = vand.u32 %v108, 4294901760
    %v1350 = vsub.f32 %v108, %v1349
    %v1351 = vand.u32 %v1350, 4294901760
    %1352 = vmatpush.msra.mxu0 %v1351
    %v1353 = vand.u32 %v106, 4294901760
    %v1354 = vsub.f32 %v106, %v1353
    %v1355 = vand.u32 %v1354, 4294901760
    %1356 = vmatpush.msra.mxu0 %v1355
    %v1357 = vand.u32 %v104, 4294901760
    %v1358 = vsub.f32 %v104, %v1357
    %v1359 = vand.u32 %v1358, 4294901760
    %1360 = vmatpush.msra.mxu0 %v1359
    %v1361 = vand.u32 %v102, 4294901760
    %v1362 = vsub.f32 %v102, %v1361
    %v1363 = vand.u32 %v1362, 4294901760
    %1364 = vmatpush.msra.mxu0 %v1363
    %v1365 = vand.u32 %v100, 4294901760
    %v1366 = vsub.f32 %v100, %v1365
    %v1367 = vand.u32 %v1366, 4294901760
    %1368 = vmatpush.msra.mxu0 %v1367
    %v1369 = vand.u32 %v98, 4294901760
    %v1370 = vsub.f32 %v98, %v1369
    %v1371 = vand.u32 %v1370, 4294901760
    %1372 = vmatpush.msra.mxu0 %v1371
    %v1373 = vand.u32 %v96, 4294901760
    %v1374 = vsub.f32 %v96, %v1373
    %v1375 = vand.u32 %v1374, 4294901760
    %1376 = vmatpush.msra.mxu0 %v1375
    %v1377 = vand.u32 %v94, 4294901760
    %v1378 = vsub.f32 %v94, %v1377
    %v1379 = vand.u32 %v1378, 4294901760
    %1380 = vmatpush.msra.mxu0 %v1379
    %v1381 = vand.u32 %v92, 4294901760
    %v1382 = vsub.f32 %v92, %v1381
    %v1383 = vand.u32 %v1382, 4294901760
    %1384 = vmatpush.msra.mxu0 %v1383
    %v1385 = vand.u32 %v90, 4294901760
    %v1386 = vsub.f32 %v90, %v1385
    %v1387 = vand.u32 %v1386, 4294901760
    %1388 = vmatpush.msra.mxu0 %v1387
    %v1389 = vand.u32 %v81, 4294901760
    %1390 = vmatmul.f32.gmra.mxu0 %v1389
    %v1391 = vpop.f32.mrf.mxu0
    %v1392 = vadd.f32 %v1305, %v1391
    %v1393 = vand.u32 %v83, 4294901760
    %1394 = vmatmul.f32.gmra.mxu0 %v1393
    %v1395 = vpop.f32.mrf.mxu0
    %v1396 = vadd.f32 %v1311, %v1395
    %v1397 = vand.u32 %v85, 4294901760
    %1398 = vmatmul.f32.gmra.mxu0 %v1397
    %v1399 = vpop.f32.mrf.mxu0
    %v1400 = vadd.f32 %v1317, %v1399
    %v1401 = vand.u32 %v87, 4294901760
    %1402 = vmatmul.f32.gmra.mxu0 %v1401
    %v1403 = vpop.f32.mrf.mxu0
    %v1404 = vadd.f32 %v1323, %v1403
    %1405 = vdwg.mxu0
    %v1406 = vand.u32 %v120, 4294901760
    %1407 = vmatpush.msra.mxu0 %v1406
    %v1408 = vand.u32 %v118, 4294901760
    %1409 = vmatpush.msra.mxu0 %v1408
    %v1410 = vand.u32 %v116, 4294901760
    %1411 = vmatpush.msra.mxu0 %v1410
    %v1412 = vand.u32 %v114, 4294901760
    %1413 = vmatpush.msra.mxu0 %v1412
    %v1414 = vand.u32 %v112, 4294901760
    %1415 = vmatpush.msra.mxu0 %v1414
    %v1416 = vand.u32 %v110, 4294901760
    %1417 = vmatpush.msra.mxu0 %v1416
    %v1418 = vand.u32 %v108, 4294901760
    %1419 = vmatpush.msra.mxu0 %v1418
    %v1420 = vand.u32 %v106, 4294901760
    %1421 = vmatpush.msra.mxu0 %v1420
    %v1422 = vand.u32 %v104, 4294901760
    %1423 = vmatpush.msra.mxu0 %v1422
    %v1424 = vand.u32 %v102, 4294901760
    %1425 = vmatpush.msra.mxu0 %v1424
    %v1426 = vand.u32 %v100, 4294901760
    %1427 = vmatpush.msra.mxu0 %v1426
    %v1428 = vand.u32 %v98, 4294901760
    %1429 = vmatpush.msra.mxu0 %v1428
    %v1430 = vand.u32 %v96, 4294901760
    %1431 = vmatpush.msra.mxu0 %v1430
    %v1432 = vand.u32 %v94, 4294901760
    %1433 = vmatpush.msra.mxu0 %v1432
    %v1434 = vand.u32 %v92, 4294901760
    %1435 = vmatpush.msra.mxu0 %v1434
    %v1436 = vand.u32 %v90, 4294901760
    %1437 = vmatpush.msra.mxu0 %v1436
    %v1438 = vand.u32 %v81, 4294901760
    %1439 = vmatmul.f32.gmra.mxu0 %v1438
    %v1440 = vpop.f32.mrf.mxu0
    %v1441 = vadd.f32 %v1392, %v1440
    %v1442 = vand.u32 %v83, 4294901760
    %1443 = vmatmul.f32.gmra.mxu0 %v1442
    %v1444 = vpop.f32.mrf.mxu0
    %v1445 = vadd.f32 %v1396, %v1444
    %v1446 = vand.u32 %v85, 4294901760
    %1447 = vmatmul.f32.gmra.mxu0 %v1446
    %v1448 = vpop.f32.mrf.mxu0
    %v1449 = vadd.f32 %v1400, %v1448
    %v1450 = vand.u32 %v87, 4294901760
    %1451 = vmatmul.f32.gmra.mxu0 %v1450
    %v1452 = vpop.f32.mrf.mxu0
    %v1453 = vadd.f32 %v1404, %v1452
    %1454 = vdwg.mxu0
    %v1455 = vand.u32 %v152, 4294901760
    %1456 = vmatpush.msra.mxu0 %v1455
    %v1457 = vand.u32 %v150, 4294901760
    %1458 = vmatpush.msra.mxu0 %v1457
    %v1459 = vand.u32 %v148, 4294901760
    %1460 = vmatpush.msra.mxu0 %v1459
    %v1461 = vand.u32 %v146, 4294901760
    %1462 = vmatpush.msra.mxu0 %v1461
    %v1463 = vand.u32 %v144, 4294901760
    %1464 = vmatpush.msra.mxu0 %v1463
    %v1465 = vand.u32 %v142, 4294901760
    %1466 = vmatpush.msra.mxu0 %v1465
    %v1467 = vand.u32 %v140, 4294901760
    %1468 = vmatpush.msra.mxu0 %v1467
    %v1469 = vand.u32 %v138, 4294901760
    %1470 = vmatpush.msra.mxu0 %v1469
    %v1471 = vand.u32 %v136, 4294901760
    %1472 = vmatpush.msra.mxu0 %v1471
    %v1473 = vand.u32 %v134, 4294901760
    %1474 = vmatpush.msra.mxu0 %v1473
    %v1475 = vand.u32 %v132, 4294901760
    %1476 = vmatpush.msra.mxu0 %v1475
    %v1477 = vand.u32 %v130, 4294901760
    %1478 = vmatpush.msra.mxu0 %v1477
    %v1479 = vand.u32 %v128, 4294901760
    %1480 = vmatpush.msra.mxu0 %v1479
    %v1481 = vand.u32 %v126, 4294901760
    %1482 = vmatpush.msra.mxu0 %v1481
    %v1483 = vand.u32 %v124, 4294901760
    %1484 = vmatpush.msra.mxu0 %v1483
    %v1485 = vand.u32 %v122, 4294901760
    %1486 = vmatpush.msra.mxu0 %v1485
    %v1487 = vand.u32 %v82, 4294901760
    %v1488 = vsub.f32 %v82, %v1487
    %v1489 = vand.u32 %v1488, 4294901760
    %v1490 = vsub.f32 %v1488, %v1489
    %v1491 = vand.u32 %v1490, 4294901760
    %1492 = vmatmul.f32.gmra.mxu0 %v1491
    %v1493 = vpop.f32.mrf.mxu0
    %v1494 = vadd.f32 %v1441, %v1493
    %v1495 = vand.u32 %v84, 4294901760
    %v1496 = vsub.f32 %v84, %v1495
    %v1497 = vand.u32 %v1496, 4294901760
    %v1498 = vsub.f32 %v1496, %v1497
    %v1499 = vand.u32 %v1498, 4294901760
    %1500 = vmatmul.f32.gmra.mxu0 %v1499
    %v1501 = vpop.f32.mrf.mxu0
    %v1502 = vadd.f32 %v1445, %v1501
    %v1503 = vand.u32 %v86, 4294901760
    %v1504 = vsub.f32 %v86, %v1503
    %v1505 = vand.u32 %v1504, 4294901760
    %v1506 = vsub.f32 %v1504, %v1505
    %v1507 = vand.u32 %v1506, 4294901760
    %1508 = vmatmul.f32.gmra.mxu0 %v1507
    %v1509 = vpop.f32.mrf.mxu0
    %v1510 = vadd.f32 %v1449, %v1509
    %v1511 = vand.u32 %v88, 4294901760
    %v1512 = vsub.f32 %v88, %v1511
    %v1513 = vand.u32 %v1512, 4294901760
    %v1514 = vsub.f32 %v1512, %v1513
    %v1515 = vand.u32 %v1514, 4294901760
    %1516 = vmatmul.f32.gmra.mxu0 %v1515
    %v1517 = vpop.f32.mrf.mxu0
    %v1518 = vadd.f32 %v1453, %v1517
    %1519 = vdwg.mxu0
    %v1520 = vand.u32 %v152, 4294901760
    %v1521 = vsub.f32 %v152, %v1520
    %v1522 = vand.u32 %v1521, 4294901760
    %v1523 = vsub.f32 %v1521, %v1522
    %v1524 = vand.u32 %v1523, 4294901760
    %1525 = vmatpush.msra.mxu0 %v1524
    %v1526 = vand.u32 %v150, 4294901760
    %v1527 = vsub.f32 %v150, %v1526
    %v1528 = vand.u32 %v1527, 4294901760
    %v1529 = vsub.f32 %v1527, %v1528
    %v1530 = vand.u32 %v1529, 4294901760
    %1531 = vmatpush.msra.mxu0 %v1530
    %v1532 = vand.u32 %v148, 4294901760
    %v1533 = vsub.f32 %v148, %v1532
    %v1534 = vand.u32 %v1533, 4294901760
    %v1535 = vsub.f32 %v1533, %v1534
    %v1536 = vand.u32 %v1535, 4294901760
    %1537 = vmatpush.msra.mxu0 %v1536
    %v1538 = vand.u32 %v146, 4294901760
    %v1539 = vsub.f32 %v146, %v1538
    %v1540 = vand.u32 %v1539, 4294901760
    %v1541 = vsub.f32 %v1539, %v1540
    %v1542 = vand.u32 %v1541, 4294901760
    %1543 = vmatpush.msra.mxu0 %v1542
    %v1544 = vand.u32 %v144, 4294901760
    %v1545 = vsub.f32 %v144, %v1544
    %v1546 = vand.u32 %v1545, 4294901760
    %v1547 = vsub.f32 %v1545, %v1546
    %v1548 = vand.u32 %v1547, 4294901760
    %1549 = vmatpush.msra.mxu0 %v1548
    %v1550 = vand.u32 %v142, 4294901760
    %v1551 = vsub.f32 %v142, %v1550
    %v1552 = vand.u32 %v1551, 4294901760
    %v1553 = vsub.f32 %v1551, %v1552
    %v1554 = vand.u32 %v1553, 4294901760
    %1555 = vmatpush.msra.mxu0 %v1554
    %v1556 = vand.u32 %v140, 4294901760
    %v1557 = vsub.f32 %v140, %v1556
    %v1558 = vand.u32 %v1557, 4294901760
    %v1559 = vsub.f32 %v1557, %v1558
    %v1560 = vand.u32 %v1559, 4294901760
    %1561 = vmatpush.msra.mxu0 %v1560
    %v1562 = vand.u32 %v138, 4294901760
    %v1563 = vsub.f32 %v138, %v1562
    %v1564 = vand.u32 %v1563, 4294901760
    %v1565 = vsub.f32 %v1563, %v1564
    %v1566 = vand.u32 %v1565, 4294901760
    %1567 = vmatpush.msra.mxu0 %v1566
    %v1568 = vand.u32 %v136, 4294901760
    %v1569 = vsub.f32 %v136, %v1568
    %v1570 = vand.u32 %v1569, 4294901760
    %v1571 = vsub.f32 %v1569, %v1570
    %v1572 = vand.u32 %v1571, 4294901760
    %1573 = vmatpush.msra.mxu0 %v1572
    %v1574 = vand.u32 %v134, 4294901760
    %v1575 = vsub.f32 %v134, %v1574
    %v1576 = vand.u32 %v1575, 4294901760
    %v1577 = vsub.f32 %v1575, %v1576
    %v1578 = vand.u32 %v1577, 4294901760
    %1579 = vmatpush.msra.mxu0 %v1578
    %v1580 = vand.u32 %v132, 4294901760
    %v1581 = vsub.f32 %v132, %v1580
    %v1582 = vand.u32 %v1581, 4294901760
    %v1583 = vsub.f32 %v1581, %v1582
    %v1584 = vand.u32 %v1583, 4294901760
    %1585 = vmatpush.msra.mxu0 %v1584
    %v1586 = vand.u32 %v130, 4294901760
    %v1587 = vsub.f32 %v130, %v1586
    %v1588 = vand.u32 %v1587, 4294901760
    %v1589 = vsub.f32 %v1587, %v1588
    %v1590 = vand.u32 %v1589, 4294901760
    %1591 = vmatpush.msra.mxu0 %v1590
    %v1592 = vand.u32 %v128, 4294901760
    %v1593 = vsub.f32 %v128, %v1592
    %v1594 = vand.u32 %v1593, 4294901760
    %v1595 = vsub.f32 %v1593, %v1594
    %v1596 = vand.u32 %v1595, 4294901760
    %1597 = vmatpush.msra.mxu0 %v1596
    %v1598 = vand.u32 %v126, 4294901760
    %v1599 = vsub.f32 %v126, %v1598
    %v1600 = vand.u32 %v1599, 4294901760
    %v1601 = vsub.f32 %v1599, %v1600
    %v1602 = vand.u32 %v1601, 4294901760
    %1603 = vmatpush.msra.mxu0 %v1602
    %v1604 = vand.u32 %v124, 4294901760
    %v1605 = vsub.f32 %v124, %v1604
    %v1606 = vand.u32 %v1605, 4294901760
    %v1607 = vsub.f32 %v1605, %v1606
    %v1608 = vand.u32 %v1607, 4294901760
    %1609 = vmatpush.msra.mxu0 %v1608
    %v1610 = vand.u32 %v122, 4294901760
    %v1611 = vsub.f32 %v122, %v1610
    %v1612 = vand.u32 %v1611, 4294901760
    %v1613 = vsub.f32 %v1611, %v1612
    %v1614 = vand.u32 %v1613, 4294901760
    %1615 = vmatpush.msra.mxu0 %v1614
    %v1616 = vand.u32 %v82, 4294901760
    %1617 = vmatmul.f32.gmra.mxu0 %v1616
    %v1618 = vpop.f32.mrf.mxu0
    %v1619 = vadd.f32 %v1494, %v1618
    %v1620 = vand.u32 %v84, 4294901760
    %1621 = vmatmul.f32.gmra.mxu0 %v1620
    %v1622 = vpop.f32.mrf.mxu0
    %v1623 = vadd.f32 %v1502, %v1622
    %v1624 = vand.u32 %v86, 4294901760
    %1625 = vmatmul.f32.gmra.mxu0 %v1624
    %v1626 = vpop.f32.mrf.mxu0
    %v1627 = vadd.f32 %v1510, %v1626
    %v1628 = vand.u32 %v88, 4294901760
    %1629 = vmatmul.f32.gmra.mxu0 %v1628
    %v1630 = vpop.f32.mrf.mxu0
    %v1631 = vadd.f32 %v1518, %v1630
    %1632 = vdwg.mxu0
    %v1633 = vand.u32 %v152, 4294901760
    %v1634 = vsub.f32 %v152, %v1633
    %1635 = vmatpush.msra.mxu0 %v1634
    %v1636 = vand.u32 %v150, 4294901760
    %v1637 = vsub.f32 %v150, %v1636
    %1638 = vmatpush.msra.mxu0 %v1637
    %v1639 = vand.u32 %v148, 4294901760
    %v1640 = vsub.f32 %v148, %v1639
    %1641 = vmatpush.msra.mxu0 %v1640
    %v1642 = vand.u32 %v146, 4294901760
    %v1643 = vsub.f32 %v146, %v1642
    %1644 = vmatpush.msra.mxu0 %v1643
    %v1645 = vand.u32 %v144, 4294901760
    %v1646 = vsub.f32 %v144, %v1645
    %1647 = vmatpush.msra.mxu0 %v1646
    %v1648 = vand.u32 %v142, 4294901760
    %v1649 = vsub.f32 %v142, %v1648
    %1650 = vmatpush.msra.mxu0 %v1649
    %v1651 = vand.u32 %v140, 4294901760
    %v1652 = vsub.f32 %v140, %v1651
    %1653 = vmatpush.msra.mxu0 %v1652
    %v1654 = vand.u32 %v138, 4294901760
    %v1655 = vsub.f32 %v138, %v1654
    %1656 = vmatpush.msra.mxu0 %v1655
    %v1657 = vand.u32 %v136, 4294901760
    %v1658 = vsub.f32 %v136, %v1657
    %1659 = vmatpush.msra.mxu0 %v1658
    %v1660 = vand.u32 %v134, 4294901760
    %v1661 = vsub.f32 %v134, %v1660
    %1662 = vmatpush.msra.mxu0 %v1661
    %v1663 = vand.u32 %v132, 4294901760
    %v1664 = vsub.f32 %v132, %v1663
    %1665 = vmatpush.msra.mxu0 %v1664
    %v1666 = vand.u32 %v130, 4294901760
    %v1667 = vsub.f32 %v130, %v1666
    %1668 = vmatpush.msra.mxu0 %v1667
    %v1669 = vand.u32 %v128, 4294901760
    %v1670 = vsub.f32 %v128, %v1669
    %1671 = vmatpush.msra.mxu0 %v1670
    %v1672 = vand.u32 %v126, 4294901760
    %v1673 = vsub.f32 %v126, %v1672
    %1674 = vmatpush.msra.mxu0 %v1673
    %v1675 = vand.u32 %v124, 4294901760
    %v1676 = vsub.f32 %v124, %v1675
    %1677 = vmatpush.msra.mxu0 %v1676
    %v1678 = vand.u32 %v122, 4294901760
    %v1679 = vsub.f32 %v122, %v1678
    %1680 = vmatpush.msra.mxu0 %v1679
    %v1681 = vand.u32 %v82, 4294901760
    %v1682 = vsub.f32 %v82, %v1681
    %1683 = vmatmul.f32.gmra.mxu0 %v1682
    %v1684 = vpop.f32.mrf.mxu0
    %v1685 = vadd.f32 %v1619, %v1684
    %v1686 = vand.u32 %v84, 4294901760
    %v1687 = vsub.f32 %v84, %v1686
    %1688 = vmatmul.f32.gmra.mxu0 %v1687
    %v1689 = vpop.f32.mrf.mxu0
    %v1690 = vadd.f32 %v1623, %v1689
    %v1691 = vand.u32 %v86, 4294901760
    %v1692 = vsub.f32 %v86, %v1691
    %1693 = vmatmul.f32.gmra.mxu0 %v1692
    %v1694 = vpop.f32.mrf.mxu0
    %v1695 = vadd.f32 %v1627, %v1694
    %v1696 = vand.u32 %v88, 4294901760
    %v1697 = vsub.f32 %v88, %v1696
    %1698 = vmatmul.f32.gmra.mxu0 %v1697
    %v1699 = vpop.f32.mrf.mxu0
    %v1700 = vadd.f32 %v1631, %v1699
    %1701 = vdwg.mxu0
    %v1702 = vand.u32 %v152, 4294901760
    %1703 = vmatpush.msra.mxu0 %v1702
    %v1704 = vand.u32 %v150, 4294901760
    %1705 = vmatpush.msra.mxu0 %v1704
    %v1706 = vand.u32 %v148, 4294901760
    %1707 = vmatpush.msra.mxu0 %v1706
    %v1708 = vand.u32 %v146, 4294901760
    %1709 = vmatpush.msra.mxu0 %v1708
    %v1710 = vand.u32 %v144, 4294901760
    %1711 = vmatpush.msra.mxu0 %v1710
    %v1712 = vand.u32 %v142, 4294901760
    %1713 = vmatpush.msra.mxu0 %v1712
    %v1714 = vand.u32 %v140, 4294901760
    %1715 = vmatpush.msra.mxu0 %v1714
    %v1716 = vand.u32 %v138, 4294901760
    %1717 = vmatpush.msra.mxu0 %v1716
    %v1718 = vand.u32 %v136, 4294901760
    %1719 = vmatpush.msra.mxu0 %v1718
    %v1720 = vand.u32 %v134, 4294901760
    %1721 = vmatpush.msra.mxu0 %v1720
    %v1722 = vand.u32 %v132, 4294901760
    %1723 = vmatpush.msra.mxu0 %v1722
    %v1724 = vand.u32 %v130, 4294901760
    %1725 = vmatpush.msra.mxu0 %v1724
    %v1726 = vand.u32 %v128, 4294901760
    %1727 = vmatpush.msra.mxu0 %v1726
    %v1728 = vand.u32 %v126, 4294901760
    %1729 = vmatpush.msra.mxu0 %v1728
    %v1730 = vand.u32 %v124, 4294901760
    %1731 = vmatpush.msra.mxu0 %v1730
    %v1732 = vand.u32 %v122, 4294901760
    %1733 = vmatpush.msra.mxu0 %v1732
    %v1734 = vand.u32 %v82, 4294901760
    %v1735 = vsub.f32 %v82, %v1734
    %v1736 = vand.u32 %v1735, 4294901760
    %1737 = vmatmul.f32.gmra.mxu0 %v1736
    %v1738 = vpop.f32.mrf.mxu0
    %v1739 = vadd.f32 %v1685, %v1738
    %v1740 = vand.u32 %v84, 4294901760
    %v1741 = vsub.f32 %v84, %v1740
    %v1742 = vand.u32 %v1741, 4294901760
    %1743 = vmatmul.f32.gmra.mxu0 %v1742
    %v1744 = vpop.f32.mrf.mxu0
    %v1745 = vadd.f32 %v1690, %v1744
    %v1746 = vand.u32 %v86, 4294901760
    %v1747 = vsub.f32 %v86, %v1746
    %v1748 = vand.u32 %v1747, 4294901760
    %1749 = vmatmul.f32.gmra.mxu0 %v1748
    %v1750 = vpop.f32.mrf.mxu0
    %v1751 = vadd.f32 %v1695, %v1750
    %v1752 = vand.u32 %v88, 4294901760
    %v1753 = vsub.f32 %v88, %v1752
    %v1754 = vand.u32 %v1753, 4294901760
    %1755 = vmatmul.f32.gmra.mxu0 %v1754
    %v1756 = vpop.f32.mrf.mxu0
    %v1757 = vadd.f32 %v1700, %v1756
    %1758 = vdwg.mxu0
    %v1759 = vand.u32 %v152, 4294901760
    %v1760 = vsub.f32 %v152, %v1759
    %v1761 = vand.u32 %v1760, 4294901760
    %1762 = vmatpush.msra.mxu0 %v1761
    %v1763 = vand.u32 %v150, 4294901760
    %v1764 = vsub.f32 %v150, %v1763
    %v1765 = vand.u32 %v1764, 4294901760
    %1766 = vmatpush.msra.mxu0 %v1765
    %v1767 = vand.u32 %v148, 4294901760
    %v1768 = vsub.f32 %v148, %v1767
    %v1769 = vand.u32 %v1768, 4294901760
    %1770 = vmatpush.msra.mxu0 %v1769
    %v1771 = vand.u32 %v146, 4294901760
    %v1772 = vsub.f32 %v146, %v1771
    %v1773 = vand.u32 %v1772, 4294901760
    %1774 = vmatpush.msra.mxu0 %v1773
    %v1775 = vand.u32 %v144, 4294901760
    %v1776 = vsub.f32 %v144, %v1775
    %v1777 = vand.u32 %v1776, 4294901760
    %1778 = vmatpush.msra.mxu0 %v1777
    %v1779 = vand.u32 %v142, 4294901760
    %v1780 = vsub.f32 %v142, %v1779
    %v1781 = vand.u32 %v1780, 4294901760
    %1782 = vmatpush.msra.mxu0 %v1781
    %v1783 = vand.u32 %v140, 4294901760
    %v1784 = vsub.f32 %v140, %v1783
    %v1785 = vand.u32 %v1784, 4294901760
    %1786 = vmatpush.msra.mxu0 %v1785
    %v1787 = vand.u32 %v138, 4294901760
    %v1788 = vsub.f32 %v138, %v1787
    %v1789 = vand.u32 %v1788, 4294901760
    %1790 = vmatpush.msra.mxu0 %v1789
    %v1791 = vand.u32 %v136, 4294901760
    %v1792 = vsub.f32 %v136, %v1791
    %v1793 = vand.u32 %v1792, 4294901760
    %1794 = vmatpush.msra.mxu0 %v1793
    %v1795 = vand.u32 %v134, 4294901760
    %v1796 = vsub.f32 %v134, %v1795
    %v1797 = vand.u32 %v1796, 4294901760
    %1798 = vmatpush.msra.mxu0 %v1797
    %v1799 = vand.u32 %v132, 4294901760
    %v1800 = vsub.f32 %v132, %v1799
    %v1801 = vand.u32 %v1800, 4294901760
    %1802 = vmatpush.msra.mxu0 %v1801
    %v1803 = vand.u32 %v130, 4294901760
    %v1804 = vsub.f32 %v130, %v1803
    %v1805 = vand.u32 %v1804, 4294901760
    %1806 = vmatpush.msra.mxu0 %v1805
    %v1807 = vand.u32 %v128, 4294901760
    %v1808 = vsub.f32 %v128, %v1807
    %v1809 = vand.u32 %v1808, 4294901760
    %1810 = vmatpush.msra.mxu0 %v1809
    %v1811 = vand.u32 %v126, 4294901760
    %v1812 = vsub.f32 %v126, %v1811
    %v1813 = vand.u32 %v1812, 4294901760
    %1814 = vmatpush.msra.mxu0 %v1813
    %v1815 = vand.u32 %v124, 4294901760
    %v1816 = vsub.f32 %v124, %v1815
    %v1817 = vand.u32 %v1816, 4294901760
    %1818 = vmatpush.msra.mxu0 %v1817
    %v1819 = vand.u32 %v122, 4294901760
    %v1820 = vsub.f32 %v122, %v1819
    %v1821 = vand.u32 %v1820, 4294901760
    %1822 = vmatpush.msra.mxu0 %v1821
    %v1823 = vand.u32 %v82, 4294901760
    %1824 = vmatmul.f32.gmra.mxu0 %v1823
    %v1825 = vpop.f32.mrf.mxu0
    %v1826 = vadd.f32 %v1739, %v1825
    %v1827 = vand.u32 %v84, 4294901760
    %1828 = vmatmul.f32.gmra.mxu0 %v1827
    %v1829 = vpop.f32.mrf.mxu0
    %v1830 = vadd.f32 %v1745, %v1829
    %v1831 = vand.u32 %v86, 4294901760
    %1832 = vmatmul.f32.gmra.mxu0 %v1831
    %v1833 = vpop.f32.mrf.mxu0
    %v1834 = vadd.f32 %v1751, %v1833
    %v1835 = vand.u32 %v88, 4294901760
    %1836 = vmatmul.f32.gmra.mxu0 %v1835
    %v1837 = vpop.f32.mrf.mxu0
    %v1838 = vadd.f32 %v1757, %v1837
    %1839 = vdwg.mxu0
    %v1840 = vand.u32 %v152, 4294901760
    %1841 = vmatpush.msra.mxu0 %v1840
    %v1842 = vand.u32 %v150, 4294901760
    %1843 = vmatpush.msra.mxu0 %v1842
    %v1844 = vand.u32 %v148, 4294901760
    %1845 = vmatpush.msra.mxu0 %v1844
    %v1846 = vand.u32 %v146, 4294901760
    %1847 = vmatpush.msra.mxu0 %v1846
    %v1848 = vand.u32 %v144, 4294901760
    %1849 = vmatpush.msra.mxu0 %v1848
    %v1850 = vand.u32 %v142, 4294901760
    %1851 = vmatpush.msra.mxu0 %v1850
    %v1852 = vand.u32 %v140, 4294901760
    %1853 = vmatpush.msra.mxu0 %v1852
    %v1854 = vand.u32 %v138, 4294901760
    %1855 = vmatpush.msra.mxu0 %v1854
    %v1856 = vand.u32 %v136, 4294901760
    %1857 = vmatpush.msra.mxu0 %v1856
    %v1858 = vand.u32 %v134, 4294901760
    %1859 = vmatpush.msra.mxu0 %v1858
    %v1860 = vand.u32 %v132, 4294901760
    %1861 = vmatpush.msra.mxu0 %v1860
    %v1862 = vand.u32 %v130, 4294901760
    %1863 = vmatpush.msra.mxu0 %v1862
    %v1864 = vand.u32 %v128, 4294901760
    %1865 = vmatpush.msra.mxu0 %v1864
    %v1866 = vand.u32 %v126, 4294901760
    %1867 = vmatpush.msra.mxu0 %v1866
    %v1868 = vand.u32 %v124, 4294901760
    %1869 = vmatpush.msra.mxu0 %v1868
    %v1870 = vand.u32 %v122, 4294901760
    %1871 = vmatpush.msra.mxu0 %v1870
    %v1872 = vand.u32 %v82, 4294901760
    %1873 = vmatmul.f32.gmra.mxu0 %v1872
    %v1874 = vpop.f32.mrf.mxu0
    %v1875 = vadd.f32 %v1826, %v1874
    %v1876 = vand.u32 %v84, 4294901760
    %1877 = vmatmul.f32.gmra.mxu0 %v1876
    %v1878 = vpop.f32.mrf.mxu0
    %v1879 = vadd.f32 %v1830, %v1878
    %v1880 = vand.u32 %v86, 4294901760
    %1881 = vmatmul.f32.gmra.mxu0 %v1880
    %v1882 = vpop.f32.mrf.mxu0
    %v1883 = vadd.f32 %v1834, %v1882
    %v1884 = vand.u32 %v88, 4294901760
    %1885 = vmatmul.f32.gmra.mxu0 %v1884
    %v1886 = vpop.f32.mrf.mxu0
    %v1887 = vadd.f32 %v1838, %v1886
    %1888 = vdwg.mxu0
    %v1889 = vld [vmem:[#allocation7] sm:$0xff]
    %v1890 = vld [vmem:[#allocation7 + $0x8] sm:$0xff]
    %v1891 = vld [vmem:[#allocation7 + $0x10] sm:$0xff]
    %v1892 = vld [vmem:[#allocation7 + $0x18] sm:$0xff]
    %vm1893 = vcmask 261120
    %v1895 = vsel %vm1893, %v1889, 0
    %v1898 = vsel %vm1893, %v1890, 0
    %v1901 = vsel %vm1893, %v1891, 0
    %v1904 = vsel %vm1893, %v1892, 0
    %1906 = vmatpush.msra.mxu0 0.0
    %1907 = vmatpush.msra.mxu0 0.0
    %1908 = vmatpush.msra.mxu0 0.0
    %1909 = vmatpush.msra.mxu0 0.0
    %1910 = vmatpush.msra.mxu0 0.0
    %1911 = vmatpush.msra.mxu0 0.0
    %1912 = vmatpush.msra.mxu0 0.0
    %1913 = vmatpush.msra.mxu0 0.0
    %1914 = vmatpush.msra.mxu0 0.0
    %1915 = vmatpush.msra.mxu0 0.0
    %1916 = vmatpush.msra.mxu0 0.0
    %1917 = vmatpush.msra.mxu0 0.0
    %v1918 = vand.u32 %v87, 4294901760
    %1919 = vmatpush.msra.mxu0 %v1918
    %v1920 = vand.u32 %v85, 4294901760
    %1921 = vmatpush.msra.mxu0 %v1920
    %v1922 = vand.u32 %v83, 4294901760
    %1923 = vmatpush.msra.mxu0 %v1922
    %v1924 = vand.u32 %v81, 4294901760
    %1925 = vmatpush.msra.mxu0 %v1924
    %v1926 = vand.u32 %v1895, 4294901760
    %v1927 = vsub.f32 %v1895, %v1926
    %v1928 = vand.u32 %v1927, 4294901760
    %v1929 = vsub.f32 %v1927, %v1928
    %v1930 = vand.u32 %v1929, 4294901760
    %1931 = vmatmul.f32.gmra.mxu0 %v1930
    %v1932 = vpop.f32.mrf.mxu0
    %v1933 = vadd.f32 %v1007, %v1932
    %v1934 = vand.u32 %v1898, 4294901760
    %v1935 = vsub.f32 %v1898, %v1934
    %v1936 = vand.u32 %v1935, 4294901760
    %v1937 = vsub.f32 %v1935, %v1936
    %v1938 = vand.u32 %v1937, 4294901760
    %1939 = vmatmul.f32.gmra.mxu0 %v1938
    %v1940 = vpop.f32.mrf.mxu0
    %v1941 = vadd.f32 %v1011, %v1940
    %v1942 = vand.u32 %v1901, 4294901760
    %v1943 = vsub.f32 %v1901, %v1942
    %v1944 = vand.u32 %v1943, 4294901760
    %v1945 = vsub.f32 %v1943, %v1944
    %v1946 = vand.u32 %v1945, 4294901760
    %1947 = vmatmul.f32.gmra.mxu0 %v1946
    %v1948 = vpop.f32.mrf.mxu0
    %v1949 = vadd.f32 %v1015, %v1948
    %v1950 = vand.u32 %v1904, 4294901760
    %v1951 = vsub.f32 %v1904, %v1950
    %v1952 = vand.u32 %v1951, 4294901760
    %v1953 = vsub.f32 %v1951, %v1952
    %v1954 = vand.u32 %v1953, 4294901760
    %1955 = vmatmul.f32.gmra.mxu0 %v1954
    %v1956 = vpop.f32.mrf.mxu0
    %v1957 = vadd.f32 %v1019, %v1956
    %1958 = vdwg.mxu0
    %1959 = vmatpush.msra.mxu0 0.0
    %1960 = vmatpush.msra.mxu0 0.0
    %1961 = vmatpush.msra.mxu0 0.0
    %1962 = vmatpush.msra.mxu0 0.0
    %1963 = vmatpush.msra.mxu0 0.0
    %1964 = vmatpush.msra.mxu0 0.0
    %1965 = vmatpush.msra.mxu0 0.0
    %1966 = vmatpush.msra.mxu0 0.0
    %1967 = vmatpush.msra.mxu0 0.0
    %1968 = vmatpush.msra.mxu0 0.0
    %1969 = vmatpush.msra.mxu0 0.0
    %1970 = vmatpush.msra.mxu0 0.0
    %v1971 = vand.u32 %v87, 4294901760
    %v1972 = vsub.f32 %v87, %v1971
    %v1973 = vand.u32 %v1972, 4294901760
    %v1974 = vsub.f32 %v1972, %v1973
    %v1975 = vand.u32 %v1974, 4294901760
    %1976 = vmatpush.msra.mxu0 %v1975
    %v1977 = vand.u32 %v85, 4294901760
    %v1978 = vsub.f32 %v85, %v1977
    %v1979 = vand.u32 %v1978, 4294901760
    %v1980 = vsub.f32 %v1978, %v1979
    %v1981 = vand.u32 %v1980, 4294901760
    %1982 = vmatpush.msra.mxu0 %v1981
    %v1983 = vand.u32 %v83, 4294901760
    %v1984 = vsub.f32 %v83, %v1983
    %v1985 = vand.u32 %v1984, 4294901760
    %v1986 = vsub.f32 %v1984, %v1985
    %v1987 = vand.u32 %v1986, 4294901760
    %1988 = vmatpush.msra.mxu0 %v1987
    %v1989 = vand.u32 %v81, 4294901760
    %v1990 = vsub.f32 %v81, %v1989
    %v1991 = vand.u32 %v1990, 4294901760
    %v1992 = vsub.f32 %v1990, %v1991
    %v1993 = vand.u32 %v1992, 4294901760
    %1994 = vmatpush.msra.mxu0 %v1993
    %v1995 = vand.u32 %v1895, 4294901760
    %1996 = vmatmul.f32.gmra.mxu0 %v1995
    %v1997 = vpop.f32.mrf.mxu0
    %v1998 = vadd.f32 %v1933, %v1997
    %v1999 = vand.u32 %v1898, 4294901760
    %2000 = vmatmul.f32.gmra.mxu0 %v1999
    %v2001 = vpop.f32.mrf.mxu0
    %v2002 = vadd.f32 %v1941, %v2001
    %v2003 = vand.u32 %v1901, 4294901760
    %2004 = vmatmul.f32.gmra.mxu0 %v2003
    %v2005 = vpop.f32.mrf.mxu0
    %v2006 = vadd.f32 %v1949, %v2005
    %v2007 = vand.u32 %v1904, 4294901760
    %2008 = vmatmul.f32.gmra.mxu0 %v2007
    %v2009 = vpop.f32.mrf.mxu0
    %v2010 = vadd.f32 %v1957, %v2009
    %2011 = vdwg.mxu0
    %2012 = vmatpush.msra.mxu0 0.0
    %2013 = vmatpush.msra.mxu0 0.0
    %2014 = vmatpush.msra.mxu0 0.0
    %2015 = vmatpush.msra.mxu0 0.0
    %2016 = vmatpush.msra.mxu0 0.0
    %2017 = vmatpush.msra.mxu0 0.0
    %2018 = vmatpush.msra.mxu0 0.0
    %2019 = vmatpush.msra.mxu0 0.0
    %2020 = vmatpush.msra.mxu0 0.0
    %2021 = vmatpush.msra.mxu0 0.0
    %2022 = vmatpush.msra.mxu0 0.0
    %2023 = vmatpush.msra.mxu0 0.0
    %v2024 = vand.u32 %v87, 4294901760
    %v2025 = vsub.f32 %v87, %v2024
    %2026 = vmatpush.msra.mxu0 %v2025
    %v2027 = vand.u32 %v85, 4294901760
    %v2028 = vsub.f32 %v85, %v2027
    %2029 = vmatpush.msra.mxu0 %v2028
    %v2030 = vand.u32 %v83, 4294901760
    %v2031 = vsub.f32 %v83, %v2030
    %2032 = vmatpush.msra.mxu0 %v2031
    %v2033 = vand.u32 %v81, 4294901760
    %v2034 = vsub.f32 %v81, %v2033
    %2035 = vmatpush.msra.mxu0 %v2034
    %v2036 = vand.u32 %v1895, 4294901760
    %v2037 = vsub.f32 %v1895, %v2036
    %2038 = vmatmul.f32.gmra.mxu0 %v2037
    %v2039 = vpop.f32.mrf.mxu0
    %v2040 = vadd.f32 %v1998, %v2039
    %v2041 = vand.u32 %v1898, 4294901760
    %v2042 = vsub.f32 %v1898, %v2041
    %2043 = vmatmul.f32.gmra.mxu0 %v2042
    %v2044 = vpop.f32.mrf.mxu0
    %v2045 = vadd.f32 %v2002, %v2044
    %v2046 = vand.u32 %v1901, 4294901760
    %v2047 = vsub.f32 %v1901, %v2046
    %2048 = vmatmul.f32.gmra.mxu0 %v2047
    %v2049 = vpop.f32.mrf.mxu0
    %v2050 = vadd.f32 %v2006, %v2049
    %v2051 = vand.u32 %v1904, 4294901760
    %v2052 = vsub.f32 %v1904, %v2051
    %2053 = vmatmul.f32.gmra.mxu0 %v2052
    %v2054 = vpop.f32.mrf.mxu0
    %v2055 = vadd.f32 %v2010, %v2054
    %2056 = vdwg.mxu0
    %2057 = vmatpush.msra.mxu0 0.0
    %2058 = vmatpush.msra.mxu0 0.0
    %2059 = vmatpush.msra.mxu0 0.0
    %2060 = vmatpush.msra.mxu0 0.0
    %2061 = vmatpush.msra.mxu0 0.0
    %2062 = vmatpush.msra.mxu0 0.0
    %2063 = vmatpush.msra.mxu0 0.0
    %2064 = vmatpush.msra.mxu0 0.0
    %2065 = vmatpush.msra.mxu0 0.0
    %2066 = vmatpush.msra.mxu0 0.0
    %2067 = vmatpush.msra.mxu0 0.0
    %2068 = vmatpush.msra.mxu0 0.0
    %v2069 = vand.u32 %v87, 4294901760
    %2070 = vmatpush.msra.mxu0 %v2069
    %v2071 = vand.u32 %v85, 4294901760
    %2072 = vmatpush.msra.mxu0 %v2071
    %v2073 = vand.u32 %v83, 4294901760
    %2074 = vmatpush.msra.mxu0 %v2073
    %v2075 = vand.u32 %v81, 4294901760
    %2076 = vmatpush.msra.mxu0 %v2075
    %v2077 = vand.u32 %v1895, 4294901760
    %v2078 = vsub.f32 %v1895, %v2077
    %v2079 = vand.u32 %v2078, 4294901760
    %2080 = vmatmul.f32.gmra.mxu0 %v2079
    %v2081 = vpop.f32.mrf.mxu0
    %v2082 = vadd.f32 %v2040, %v2081
    %v2083 = vand.u32 %v1898, 4294901760
    %v2084 = vsub.f32 %v1898, %v2083
    %v2085 = vand.u32 %v2084, 4294901760
    %2086 = vmatmul.f32.gmra.mxu0 %v2085
    %v2087 = vpop.f32.mrf.mxu0
    %v2088 = vadd.f32 %v2045, %v2087
    %v2089 = vand.u32 %v1901, 4294901760
    %v2090 = vsub.f32 %v1901, %v2089
    %v2091 = vand.u32 %v2090, 4294901760
    %2092 = vmatmul.f32.gmra.mxu0 %v2091
    %v2093 = vpop.f32.mrf.mxu0
    %v2094 = vadd.f32 %v2050, %v2093
    %v2095 = vand.u32 %v1904, 4294901760
    %v2096 = vsub.f32 %v1904, %v2095
    %v2097 = vand.u32 %v2096, 4294901760
    %2098 = vmatmul.f32.gmra.mxu0 %v2097
    %v2099 = vpop.f32.mrf.mxu0
    %v2100 = vadd.f32 %v2055, %v2099
    %2101 = vdwg.mxu0
    %2102 = vmatpush.msra.mxu0 0.0
    %2103 = vmatpush.msra.mxu0 0.0
    %2104 = vmatpush.msra.mxu0 0.0
    %2105 = vmatpush.msra.mxu0 0.0
    %2106 = vmatpush.msra.mxu0 0.0
    %2107 = vmatpush.msra.mxu0 0.0
    %2108 = vmatpush.msra.mxu0 0.0
    %2109 = vmatpush.msra.mxu0 0.0
    %2110 = vmatpush.msra.mxu0 0.0
    %2111 = vmatpush.msra.mxu0 0.0
    %2112 = vmatpush.msra.mxu0 0.0
    %2113 = vmatpush.msra.mxu0 0.0
    %v2114 = vand.u32 %v87, 4294901760
    %v2115 = vsub.f32 %v87, %v2114
    %v2116 = vand.u32 %v2115, 4294901760
    %2117 = vmatpush.msra.mxu0 %v2116
    %v2118 = vand.u32 %v85, 4294901760
    %v2119 = vsub.f32 %v85, %v2118
    %v2120 = vand.u32 %v2119, 4294901760
    %2121 = vmatpush.msra.mxu0 %v2120
    %v2122 = vand.u32 %v83, 4294901760
    %v2123 = vsub.f32 %v83, %v2122
    %v2124 = vand.u32 %v2123, 4294901760
    %2125 = vmatpush.msra.mxu0 %v2124
    %v2126 = vand.u32 %v81, 4294901760
    %v2127 = vsub.f32 %v81, %v2126
    %v2128 = vand.u32 %v2127, 4294901760
    %2129 = vmatpush.msra.mxu0 %v2128
    %v2130 = vand.u32 %v1895, 4294901760
    %2131 = vmatmul.f32.gmra.mxu0 %v2130
    %v2132 = vpop.f32.mrf.mxu0
    %v2133 = vadd.f32 %v2082, %v2132
    %v2134 = vand.u32 %v1898, 4294901760
    %2135 = vmatmul.f32.gmra.mxu0 %v2134
    %v2136 = vpop.f32.mrf.mxu0
    %v2137 = vadd.f32 %v2088, %v2136
    %v2138 = vand.u32 %v1901, 4294901760
    %2139 = vmatmul.f32.gmra.mxu0 %v2138
    %v2140 = vpop.f32.mrf.mxu0
    %v2141 = vadd.f32 %v2094, %v2140
    %v2142 = vand.u32 %v1904, 4294901760
    %2143 = vmatmul.f32.gmra.mxu0 %v2142
    %v2144 = vpop.f32.mrf.mxu0
    %v2145 = vadd.f32 %v2100, %v2144
    %2146 = vdwg.mxu0
    %2147 = vmatpush.msra.mxu0 0.0
    %2148 = vmatpush.msra.mxu0 0.0
    %2149 = vmatpush.msra.mxu0 0.0
    %2150 = vmatpush.msra.mxu0 0.0
    %2151 = vmatpush.msra.mxu0 0.0
    %2152 = vmatpush.msra.mxu0 0.0
    %2153 = vmatpush.msra.mxu0 0.0
    %2154 = vmatpush.msra.mxu0 0.0
    %2155 = vmatpush.msra.mxu0 0.0
    %2156 = vmatpush.msra.mxu0 0.0
    %2157 = vmatpush.msra.mxu0 0.0
    %2158 = vmatpush.msra.mxu0 0.0
    %v2159 = vand.u32 %v87, 4294901760
    %2160 = vmatpush.msra.mxu0 %v2159
    %v2161 = vand.u32 %v85, 4294901760
    %2162 = vmatpush.msra.mxu0 %v2161
    %v2163 = vand.u32 %v83, 4294901760
    %2164 = vmatpush.msra.mxu0 %v2163
    %v2165 = vand.u32 %v81, 4294901760
    %2166 = vmatpush.msra.mxu0 %v2165
    %v2167 = vand.u32 %v1895, 4294901760
    %2168 = vmatmul.f32.gmra.mxu0 %v2167
    %v2169 = vpop.f32.mrf.mxu0
    %v2170 = vadd.f32 %v2133, %v2169
    %v2171 = vand.u32 %v1898, 4294901760
    %2172 = vmatmul.f32.gmra.mxu0 %v2171
    %v2173 = vpop.f32.mrf.mxu0
    %v2174 = vadd.f32 %v2137, %v2173
    %v2175 = vand.u32 %v1901, 4294901760
    %2176 = vmatmul.f32.gmra.mxu0 %v2175
    %v2177 = vpop.f32.mrf.mxu0
    %v2178 = vadd.f32 %v2141, %v2177
    %v2179 = vand.u32 %v1904, 4294901760
    %2180 = vmatmul.f32.gmra.mxu0 %v2179
    %v2181 = vpop.f32.mrf.mxu0
    %v2182 = vadd.f32 %v2145, %v2181
    %2183 = vdwg.mxu0
    %2184 = vmatpush.msra.mxu0 0.0
    %2185 = vmatpush.msra.mxu0 0.0
    %2186 = vmatpush.msra.mxu0 0.0
    %2187 = vmatpush.msra.mxu0 0.0
    %2188 = vmatpush.msra.mxu0 0.0
    %2189 = vmatpush.msra.mxu0 0.0
    %2190 = vmatpush.msra.mxu0 0.0
    %2191 = vmatpush.msra.mxu0 0.0
    %2192 = vmatpush.msra.mxu0 0.0
    %2193 = vmatpush.msra.mxu0 0.0
    %2194 = vmatpush.msra.mxu0 0.0
    %2195 = vmatpush.msra.mxu0 0.0
    %v2196 = vand.u32 %v88, 4294901760
    %2197 = vmatpush.msra.mxu0 %v2196
    %v2198 = vand.u32 %v86, 4294901760
    %2199 = vmatpush.msra.mxu0 %v2198
    %v2200 = vand.u32 %v84, 4294901760
    %2201 = vmatpush.msra.mxu0 %v2200
    %v2202 = vand.u32 %v82, 4294901760
    %2203 = vmatpush.msra.mxu0 %v2202
    %v2204 = vand.u32 %v1895, 4294901760
    %v2205 = vsub.f32 %v1895, %v2204
    %v2206 = vand.u32 %v2205, 4294901760
    %v2207 = vsub.f32 %v2205, %v2206
    %v2208 = vand.u32 %v2207, 4294901760
    %2209 = vmatmul.f32.gmra.mxu0 %v2208
    %v2210 = vpop.f32.mrf.mxu0
    %v2211 = vadd.f32 %v1875, %v2210
    %v2212 = vand.u32 %v1898, 4294901760
    %v2213 = vsub.f32 %v1898, %v2212
    %v2214 = vand.u32 %v2213, 4294901760
    %v2215 = vsub.f32 %v2213, %v2214
    %v2216 = vand.u32 %v2215, 4294901760
    %2217 = vmatmul.f32.gmra.mxu0 %v2216
    %v2218 = vpop.f32.mrf.mxu0
    %v2219 = vadd.f32 %v1879, %v2218
    %v2220 = vand.u32 %v1901, 4294901760
    %v2221 = vsub.f32 %v1901, %v2220
    %v2222 = vand.u32 %v2221, 4294901760
    %v2223 = vsub.f32 %v2221, %v2222
    %v2224 = vand.u32 %v2223, 4294901760
    %2225 = vmatmul.f32.gmra.mxu0 %v2224
    %v2226 = vpop.f32.mrf.mxu0
    %v2227 = vadd.f32 %v1883, %v2226
    %v2228 = vand.u32 %v1904, 4294901760
    %v2229 = vsub.f32 %v1904, %v2228
    %v2230 = vand.u32 %v2229, 4294901760
    %v2231 = vsub.f32 %v2229, %v2230
    %v2232 = vand.u32 %v2231, 4294901760
    %2233 = vmatmul.f32.gmra.mxu0 %v2232
    %v2234 = vpop.f32.mrf.mxu0
    %v2235 = vadd.f32 %v1887, %v2234
    %2236 = vdwg.mxu0
    %2237 = vmatpush.msra.mxu0 0.0
    %2238 = vmatpush.msra.mxu0 0.0
    %2239 = vmatpush.msra.mxu0 0.0
    %2240 = vmatpush.msra.mxu0 0.0
    %2241 = vmatpush.msra.mxu0 0.0
    %2242 = vmatpush.msra.mxu0 0.0
    %2243 = vmatpush.msra.mxu0 0.0
    %2244 = vmatpush.msra.mxu0 0.0
    %2245 = vmatpush.msra.mxu0 0.0
    %2246 = vmatpush.msra.mxu0 0.0
    %2247 = vmatpush.msra.mxu0 0.0
    %2248 = vmatpush.msra.mxu0 0.0
    %v2249 = vand.u32 %v88, 4294901760
    %v2250 = vsub.f32 %v88, %v2249
    %v2251 = vand.u32 %v2250, 4294901760
    %v2252 = vsub.f32 %v2250, %v2251
    %v2253 = vand.u32 %v2252, 4294901760
    %2254 = vmatpush.msra.mxu0 %v2253
    %v2255 = vand.u32 %v86, 4294901760
    %v2256 = vsub.f32 %v86, %v2255
    %v2257 = vand.u32 %v2256, 4294901760
    %v2258 = vsub.f32 %v2256, %v2257
    %v2259 = vand.u32 %v2258, 4294901760
    %2260 = vmatpush.msra.mxu0 %v2259
    %v2261 = vand.u32 %v84, 4294901760
    %v2262 = vsub.f32 %v84, %v2261
    %v2263 = vand.u32 %v2262, 4294901760
    %v2264 = vsub.f32 %v2262, %v2263
    %v2265 = vand.u32 %v2264, 4294901760
    %2266 = vmatpush.msra.mxu0 %v2265
    %v2267 = vand.u32 %v82, 4294901760
    %v2268 = vsub.f32 %v82, %v2267
    %v2269 = vand.u32 %v2268, 4294901760
    %v2270 = vsub.f32 %v2268, %v2269
    %v2271 = vand.u32 %v2270, 4294901760
    %2272 = vmatpush.msra.mxu0 %v2271
    %v2273 = vand.u32 %v1895, 4294901760
    %2274 = vmatmul.f32.gmra.mxu0 %v2273
    %v2275 = vpop.f32.mrf.mxu0
    %v2276 = vadd.f32 %v2211, %v2275
    %v2277 = vand.u32 %v1898, 4294901760
    %2278 = vmatmul.f32.gmra.mxu0 %v2277
    %v2279 = vpop.f32.mrf.mxu0
    %v2280 = vadd.f32 %v2219, %v2279
    %v2281 = vand.u32 %v1901, 4294901760
    %2282 = vmatmul.f32.gmra.mxu0 %v2281
    %v2283 = vpop.f32.mrf.mxu0
    %v2284 = vadd.f32 %v2227, %v2283
    %v2285 = vand.u32 %v1904, 4294901760
    %2286 = vmatmul.f32.gmra.mxu0 %v2285
    %v2287 = vpop.f32.mrf.mxu0
    %v2288 = vadd.f32 %v2235, %v2287
    %2289 = vdwg.mxu0
    %2290 = vmatpush.msra.mxu0 0.0
    %2291 = vmatpush.msra.mxu0 0.0
    %2292 = vmatpush.msra.mxu0 0.0
    %2293 = vmatpush.msra.mxu0 0.0
    %2294 = vmatpush.msra.mxu0 0.0
    %2295 = vmatpush.msra.mxu0 0.0
    %2296 = vmatpush.msra.mxu0 0.0
    %2297 = vmatpush.msra.mxu0 0.0
    %2298 = vmatpush.msra.mxu0 0.0
    %2299 = vmatpush.msra.mxu0 0.0
    %2300 = vmatpush.msra.mxu0 0.0
    %2301 = vmatpush.msra.mxu0 0.0
    %v2302 = vand.u32 %v88, 4294901760
    %v2303 = vsub.f32 %v88, %v2302
    %2304 = vmatpush.msra.mxu0 %v2303
    %v2305 = vand.u32 %v86, 4294901760
    %v2306 = vsub.f32 %v86, %v2305
    %2307 = vmatpush.msra.mxu0 %v2306
    %v2308 = vand.u32 %v84, 4294901760
    %v2309 = vsub.f32 %v84, %v2308
    %2310 = vmatpush.msra.mxu0 %v2309
    %v2311 = vand.u32 %v82, 4294901760
    %v2312 = vsub.f32 %v82, %v2311
    %2313 = vmatpush.msra.mxu0 %v2312
    %v2314 = vand.u32 %v1895, 4294901760
    %v2315 = vsub.f32 %v1895, %v2314
    %2316 = vmatmul.f32.gmra.mxu0 %v2315
    %v2317 = vpop.f32.mrf.mxu0
    %v2318 = vadd.f32 %v2276, %v2317
    %v2319 = vand.u32 %v1898, 4294901760
    %v2320 = vsub.f32 %v1898, %v2319
    %2321 = vmatmul.f32.gmra.mxu0 %v2320
    %v2322 = vpop.f32.mrf.mxu0
    %v2323 = vadd.f32 %v2280, %v2322
    %v2324 = vand.u32 %v1901, 4294901760
    %v2325 = vsub.f32 %v1901, %v2324
    %2326 = vmatmul.f32.gmra.mxu0 %v2325
    %v2327 = vpop.f32.mrf.mxu0
    %v2328 = vadd.f32 %v2284, %v2327
    %v2329 = vand.u32 %v1904, 4294901760
    %v2330 = vsub.f32 %v1904, %v2329
    %2331 = vmatmul.f32.gmra.mxu0 %v2330
    %v2332 = vpop.f32.mrf.mxu0
    %v2333 = vadd.f32 %v2288, %v2332
    %2334 = vdwg.mxu0
    %2335 = vmatpush.msra.mxu0 0.0
    %2336 = vmatpush.msra.mxu0 0.0
    %2337 = vmatpush.msra.mxu0 0.0
    %2338 = vmatpush.msra.mxu0 0.0
    %2339 = vmatpush.msra.mxu0 0.0
    %2340 = vmatpush.msra.mxu0 0.0
    %2341 = vmatpush.msra.mxu0 0.0
    %2342 = vmatpush.msra.mxu0 0.0
    %2343 = vmatpush.msra.mxu0 0.0
    %2344 = vmatpush.msra.mxu0 0.0
    %2345 = vmatpush.msra.mxu0 0.0
    %2346 = vmatpush.msra.mxu0 0.0
    %v2347 = vand.u32 %v88, 4294901760
    %2348 = vmatpush.msra.mxu0 %v2347
    %v2349 = vand.u32 %v86, 4294901760
    %2350 = vmatpush.msra.mxu0 %v2349
    %v2351 = vand.u32 %v84, 4294901760
    %2352 = vmatpush.msra.mxu0 %v2351
    %v2353 = vand.u32 %v82, 4294901760
    %2354 = vmatpush.msra.mxu0 %v2353
    %v2355 = vand.u32 %v1895, 4294901760
    %v2356 = vsub.f32 %v1895, %v2355
    %v2357 = vand.u32 %v2356, 4294901760
    %2358 = vmatmul.f32.gmra.mxu0 %v2357
    %v2359 = vpop.f32.mrf.mxu0
    %v2360 = vadd.f32 %v2318, %v2359
    %v2361 = vand.u32 %v1898, 4294901760
    %v2362 = vsub.f32 %v1898, %v2361
    %v2363 = vand.u32 %v2362, 4294901760
    %2364 = vmatmul.f32.gmra.mxu0 %v2363
    %v2365 = vpop.f32.mrf.mxu0
    %v2366 = vadd.f32 %v2323, %v2365
    %v2367 = vand.u32 %v1901, 4294901760
    %v2368 = vsub.f32 %v1901, %v2367
    %v2369 = vand.u32 %v2368, 4294901760
    %2370 = vmatmul.f32.gmra.mxu0 %v2369
    %v2371 = vpop.f32.mrf.mxu0
    %v2372 = vadd.f32 %v2328, %v2371
    %v2373 = vand.u32 %v1904, 4294901760
    %v2374 = vsub.f32 %v1904, %v2373
    %v2375 = vand.u32 %v2374, 4294901760
    %2376 = vmatmul.f32.gmra.mxu0 %v2375
    %v2377 = vpop.f32.mrf.mxu0
    %v2378 = vadd.f32 %v2333, %v2377
    %2379 = vdwg.mxu0
    %2380 = vmatpush.msra.mxu0 0.0
    %2381 = vmatpush.msra.mxu0 0.0
    %2382 = vmatpush.msra.mxu0 0.0
    %2383 = vmatpush.msra.mxu0 0.0
    %2384 = vmatpush.msra.mxu0 0.0
    %2385 = vmatpush.msra.mxu0 0.0
    %2386 = vmatpush.msra.mxu0 0.0
    %2387 = vmatpush.msra.mxu0 0.0
    %2388 = vmatpush.msra.mxu0 0.0
    %2389 = vmatpush.msra.mxu0 0.0
    %2390 = vmatpush.msra.mxu0 0.0
    %2391 = vmatpush.msra.mxu0 0.0
    %v2392 = vand.u32 %v88, 4294901760
    %v2393 = vsub.f32 %v88, %v2392
    %v2394 = vand.u32 %v2393, 4294901760
    %2395 = vmatpush.msra.mxu0 %v2394
    %v2396 = vand.u32 %v86, 4294901760
    %v2397 = vsub.f32 %v86, %v2396
    %v2398 = vand.u32 %v2397, 4294901760
    %2399 = vmatpush.msra.mxu0 %v2398
    %v2400 = vand.u32 %v84, 4294901760
    %v2401 = vsub.f32 %v84, %v2400
    %v2402 = vand.u32 %v2401, 4294901760
    %2403 = vmatpush.msra.mxu0 %v2402
    %v2404 = vand.u32 %v82, 4294901760
    %v2405 = vsub.f32 %v82, %v2404
    %v2406 = vand.u32 %v2405, 4294901760
    %2407 = vmatpush.msra.mxu0 %v2406
    %v2408 = vand.u32 %v1895, 4294901760
    %2409 = vmatmul.f32.gmra.mxu0 %v2408
    %v2410 = vpop.f32.mrf.mxu0
    %v2411 = vadd.f32 %v2360, %v2410
    %v2412 = vand.u32 %v1898, 4294901760
    %2413 = vmatmul.f32.gmra.mxu0 %v2412
    %v2414 = vpop.f32.mrf.mxu0
    %v2415 = vadd.f32 %v2366, %v2414
    %v2416 = vand.u32 %v1901, 4294901760
    %2417 = vmatmul.f32.gmra.mxu0 %v2416
    %v2418 = vpop.f32.mrf.mxu0
    %v2419 = vadd.f32 %v2372, %v2418
    %v2420 = vand.u32 %v1904, 4294901760
    %2421 = vmatmul.f32.gmra.mxu0 %v2420
    %v2422 = vpop.f32.mrf.mxu0
    %v2423 = vadd.f32 %v2378, %v2422
    %2424 = vdwg.mxu0
    %2425 = vmatpush.msra.mxu0 0.0
    %2426 = vmatpush.msra.mxu0 0.0
    %2427 = vmatpush.msra.mxu0 0.0
    %2428 = vmatpush.msra.mxu0 0.0
    %2429 = vmatpush.msra.mxu0 0.0
    %2430 = vmatpush.msra.mxu0 0.0
    %2431 = vmatpush.msra.mxu0 0.0
    %2432 = vmatpush.msra.mxu0 0.0
    %2433 = vmatpush.msra.mxu0 0.0
    %2434 = vmatpush.msra.mxu0 0.0
    %2435 = vmatpush.msra.mxu0 0.0
    %2436 = vmatpush.msra.mxu0 0.0
    %v2437 = vand.u32 %v88, 4294901760
    %2438 = vmatpush.msra.mxu0 %v2437
    %v2439 = vand.u32 %v86, 4294901760
    %2440 = vmatpush.msra.mxu0 %v2439
    %v2441 = vand.u32 %v84, 4294901760
    %2442 = vmatpush.msra.mxu0 %v2441
    %v2443 = vand.u32 %v82, 4294901760
    %2444 = vmatpush.msra.mxu0 %v2443
    %v2445 = vand.u32 %v1895, 4294901760
    %2446 = vmatmul.f32.gmra.mxu0 %v2445
    %v2447 = vpop.f32.mrf.mxu0
    %v2448 = vadd.f32 %v2411, %v2447
    %v2449 = vand.u32 %v1898, 4294901760
    %2450 = vmatmul.f32.gmra.mxu0 %v2449
    %v2451 = vpop.f32.mrf.mxu0
    %v2452 = vadd.f32 %v2415, %v2451
    %v2453 = vand.u32 %v1901, 4294901760
    %2454 = vmatmul.f32.gmra.mxu0 %v2453
    %v2455 = vpop.f32.mrf.mxu0
    %v2456 = vadd.f32 %v2419, %v2455
    %v2457 = vand.u32 %v1904, 4294901760
    %2458 = vmatmul.f32.gmra.mxu0 %v2457
    %v2459 = vpop.f32.mrf.mxu0
    %v2460 = vadd.f32 %v2423, %v2459
    %2461 = vdwg.mxu0
    %v2462 = vld [vmem:[#allocation5] sm:$0xff]
    %v2463 = vld [vmem:[#allocation5 + $0x8] sm:$0xff]
    %v2464 = vld [vmem:[#allocation5 + $0x10] sm:$0xff]
    %v2465 = vld [vmem:[#allocation5 + $0x18] sm:$0xff]
    %v2466 = vld [vmem:[#allocation5 + $0x20] sm:$0xff]
    %v2467 = vld [vmem:[#allocation5 + $0x28] sm:$0xff]
    %v2468 = vld [vmem:[#allocation5 + $0x30] sm:$0xff]
    %v2469 = vld [vmem:[#allocation5 + $0x38] sm:$0xff]
    %v2470 = vadd.f32 %v2170, %v2462
    %v2471 = vadd.f32 %v2448, %v2463
    %v2472 = vadd.f32 %v2174, %v2464
    %v2473 = vadd.f32 %v2452, %v2465
    %v2474 = vadd.f32 %v2178, %v2466
    %v2475 = vadd.f32 %v2456, %v2467
    %v2476 = vadd.f32 %v2182, %v2468
    %v2477 = vadd.f32 %v2460, %v2469
    %2478 = vst [vmem:[#allocation10] sm:$0xff] %v2470
    %2479 = vst [vmem:[#allocation10 + $0x8] sm:$0xff] %v2471
    %2480 = vst [vmem:[#allocation10 + $0x10] sm:$0xff] %v2472
    %2481 = vst [vmem:[#allocation10 + $0x18] sm:$0xff] %v2473
    %2482 = vst [vmem:[#allocation10 + $0x20] sm:$0xff] %v2474
    %2483 = vst [vmem:[#allocation10 + $0x28] sm:$0xff] %v2475
    %2484 = vst [vmem:[#allocation10 + $0x30] sm:$0xff] %v2476
    %2485 = vst [vmem:[#allocation10 + $0x38] sm:$0xff] %v2477
    // Predicated region
    $region34: #{tpu_custom_call.1} parent=1 // pred_check
      _
    $region35: #{tpu_custom_call.1} parent=1 // pred_check_branch
      %2487 = sbr.rel (0) target = $region37
    $region36: #{tpu_custom_call.1} parent=1 // pred_region
      %2489 = vsyncadd [#allocation4], 0
      %s2490 = sshll.u32 [#allocation10], 4
      %s2491 = int_to_ptr.vmem [resolvable:$true] %s2490
      %s2492 = sshll.u32 %s4, 4
      %s2493 = int_to_ptr.hbm [resolvable:$true] %s2492
      %2498 = dma.vmem_to_hbm [thread:$0]  %s2491, 1024, %s2493, [#allocation4], 256, 256, 16
    $region37: #{tpu_custom_call.1} parent=1 // pred_fallthru
      _
    // Predicated region
    $region38: #{tpu_custom_call.1} parent=1 // pred_check
      _
    $region39: #{tpu_custom_call.1} parent=1 // pred_check_branch
      %2500 = sbr.rel (0) target = $region41
    $region40: #{tpu_custom_call.1} parent=1 // pred_region
      %2502 = dma.done [#allocation4], 1024
    $region41: #{tpu_custom_call.1} parent=1 // pred_fallthru
      _
    %2503 = vsyncpa [#allocation3], 1
    %2504 = vsyncpa [#allocation6], 1
    %2505 = vsyncpa [#allocation9], 1
    %2506 = vsyncpa [#allocation4], 1

</llo_original>
